<compile_context>
chip_gen: v7x
topology: tpu7x:2x2x1
jax: 0.10.0
libtpu: 0.0.40
codegen_flags: <defaults>
</compile_context>

<pallas_src>
import math
import functools

import numpy as np
import jax
import jax.numpy as jnp
from jax.experimental import pallas as pl
from jax.experimental.pallas import tpu as pltpu


# ----------------------------------------------------------------------------
# Kernel 1: AIAConv attention + mark intensities.
# One (head, batch-block) per grid step; head axis outermost so the per-head
# fused QKVT weight stays resident across the inner batch axis.
# ----------------------------------------------------------------------------
def aia_head_kernel(x_ref, t_ref, bias_ref, em_ref, wqkvt_ref,
                    wie_ref, wit_ref, bi_ref, wblk_ref, scale_ref, iscale_ref,
                    out_ref, inty_ref, *, hf, M, num_units, per_key):
    Bt, S, F = x_ref.shape
    rows = Bt * S

    # Fused Q/K/V/T projection: one (Bt*S, F) x (F, 4*hf) MXU pass
    # (bf16 operands, f32 accumulation).
    x2 = x_ref[...].reshape(rows, F)                                    # bf16
    P = jnp.dot(x2, wqkvt_ref[0], preferred_element_type=jnp.float32)   # (rows, 4hf)
    Q = P[:, 0 * hf:1 * hf].reshape(Bt, S, hf).astype(jnp.bfloat16)
    K = P[:, 1 * hf:2 * hf].reshape(Bt, S, hf).astype(jnp.bfloat16)
    V = P[:, 2 * hf:3 * hf].reshape(Bt, S, hf).astype(jnp.bfloat16)
    T = P[:, 3 * hf:4 * hf].reshape(Bt, S, hf).astype(jnp.bfloat16)

    # Scaled dot-product attention.  Mask arrives as an additive bias
    # (0 where visible, -2^32+1 where masked), fused with the 1/sqrt(U) scale.
    # TODO(synk): for S >~ 768 (esp. v7x, 64 MiB VMEM) key-tile this region
    # with an online softmax to bound the (Bt, S, S) f32 temporaries.
    scores = jnp.einsum('bqd,bkd->bqk', Q, K,
                        preferred_element_type=jnp.float32)             # (Bt,S,S)
    scores = (scores * jnp.float32(1.0 / math.sqrt(num_units))
              + bias_ref[0].astype(jnp.float32))
    scores = scores - jnp.max(scores, axis=-1, keepdims=True)
    e = jnp.exp(scores)
    attn = e * pl.reciprocal(jnp.sum(e, axis=-1, keepdims=True), approx=True)

    # E_ = softmax(QK^T) @ T_
    E = jnp.einsum('bqk,bkd->bqd', attn.astype(jnp.bfloat16), T,
                   preferred_element_type=jnp.float32)                  # (Bt,S,hf)

    # intensities: sigmoid(fc_i([E, timespan])) -> block-diag weight_i -> softplus
    lin = (jnp.dot(E.reshape(rows, hf).astype(jnp.bfloat16), wie_ref[...],
                   preferred_element_type=jnp.float32)
           + t_ref[...].reshape(rows, 1) * wit_ref[...] + bi_ref[...])  # (rows, M*hf)
    mu = jax.nn.sigmoid(lin)
    raw = jnp.dot(mu.astype(jnp.bfloat16), wblk_ref[...],
                  preferred_element_type=jnp.float32)                   # (rows, M)
    r = raw * iscale_ref[...]                                           # raw / exp(scale_i)
    softplus = jnp.maximum(r, 0.0) + jnp.log(1.0 + jnp.exp(-jnp.abs(r)))  # stable
    inty = scale_ref[...] * softplus                                    # (rows, M) f32
    inty3 = inty.reshape(Bt, S, M)
    inty_ref[0] = inty3.astype(inty_ref.dtype)

    # mark-weighted attention
    if per_key:
        # marks constant along the query axis: mark_inty = inty @ em_k^T,
        # one tiny batched matmul instead of streaming (M, S, S) tiles.
        mark_inty = jnp.einsum('bqm,bkm->bqk', inty3.astype(jnp.bfloat16),
                               em_ref[0], preferred_element_type=jnp.float32)
    else:
        # general marks: M-step broadcast-MAC over lane-dense (S, S) tiles.
        em = em_ref[0]                                                  # (Bt,M,S,S) bf16
        mark_inty = inty3[:, :, 0:1] * em[:, 0].astype(jnp.float32)
        for m in range(1, M):
            mark_inty = mark_inty + inty3[:, :, m:m + 1] * em[:, m].astype(jnp.float32)

    attn = attn * mark_inty
    # TODO(synk): att_drop (nn.Dropout) omitted -- p=0.0 -> identity.
    out = jnp.einsum('bqk,bkd->bqd', attn.astype(jnp.bfloat16), V,
                     preferred_element_type=jnp.float32)
    out_ref[...] = out.astype(out_ref.dtype)   # lane-dense (Bt,S,hf) slab of (B,S,U)


# ----------------------------------------------------------------------------
# Kernel 2: residual + fc_before + residual + LN + GELU MLP + residual + LN,
#           row-tiled over B*S with resident (constant index-map) weights.
# ----------------------------------------------------------------------------
def _layernorm(x, g, b, eps=1e-5):
    mu = jnp.mean(x, axis=-1, keepdims=True)
    var = jnp.mean(jnp.square(x - mu), axis=-1, keepdims=True)
    return (x - mu) * jax.lax.rsqrt(var + eps) * g + b


def ffn_ln_kernel(x_ref, res_ref,
                  wb_ref, bb_ref, g1_ref, b1_ref,
                  wm_ref, bm_ref, wa_ref, ba_ref, g2_ref, b2_ref,
                  o_ref):
    res = res_ref[...]                                         # (TM, U) f32 residual anchor
    x_in = x_ref[...].astype(jnp.float32) + res                # conv residual (outs += queries[..., :U])
    h = jnp.dot(x_in.astype(jnp.bfloat16), wb_ref[...],
                preferred_element_type=jnp.float32) + bb_ref[...]
    # TODO(synk): drop_before / drop_after (nn.Dropout) omitted -- p=0.0 -> identity.
    h = h + res                                                # + layer_inputs[..., :U]
    h = _layernorm(h, g1_ref[...], b1_ref[...])
    z = jnp.dot(h.astype(jnp.bfloat16), wm_ref[...],
                preferred_element_type=jnp.float32) + bm_ref[...]
    z = jax.nn.gelu(z, approximate=False)                      # torch nn.GELU (erf)
    z = jnp.dot(z.astype(jnp.bfloat16), wa_ref[...],
                preferred_element_type=jnp.float32) + ba_ref[...]
    z = z + h
    o_ref[...] = _layernorm(z, g2_ref[...], b2_ref[...]).astype(o_ref.dtype)


# ----------------------------------------------------------------------------
# Tiling helpers
# ----------------------------------------------------------------------------
def _pick_batch_fold(B, S, F, hf, M, dense, budget_bytes=24 * 1024 * 1024):
    # Per-batch-element bytes: double-buffered in/out streams + f32 temporaries.
    stream = (S * F * 2 + S * 4 + S * S * 2
              + (M * S * S * 2 if dense else S * M * 2)
              + S * hf * 2 + S * M * 4)
    temps = 5 * S * S * 4 + S * (5 * hf + 2 * M * hf + M) * 4
    per_b = 2 * stream + temps
    for cand in range(B, 0, -1):
        if B % cand == 0 and cand * per_b <= budget_bytes:
            return cand
    return 1


def _max_row_tile():
    # Generation gate for kernel 2: larger row tiles on 128-MiB-VMEM parts
    # (v5e/v6e); stay at 512 on v7x (64 MiB per TensorCore).
    try:
        vmem = getattr(pltpu.get_tpu_info(), "vmem_capacity_bytes", 0)
        if vmem and vmem >= 100 * 1024 * 1024:
            return 1024
    except Exception:
        pass
    return 512


def _row_tile(rows, max_tile):
    for cand in (2048, 1024, 512, 256, 128, 64, 32, 16, 8):
        if cand <= max_tile and cand <= rows and rows % cand == 0:
            return cand
    return rows


# ----------------------------------------------------------------------------
# Wrapper: parameter re-layout + two pallas_calls.
# ----------------------------------------------------------------------------
def ctsma_transformer(nfeat, tfeat, attention_masks, event_marks, p, H, M,
                      *, marks_per_key=False):
    B, S, F = nfeat.shape
    U = p['wq'].shape[0]
    hf = U // H
    assert hf % 128 == 0 or H == 1, \
        "head width must be 128-lane aligned for the direct (B,S,U) write"

    def head_w(w):            # torch Linear weight (U, F) -> (H, F, hf)
        return w.T.reshape(F, H, hf).transpose(1, 0, 2)

    # fused per-head projection weight (H, F, 4*hf), bf16 MXU operand
    wqkvt = jnp.concatenate([head_w(p['wq']), head_w(p['wk']),
                             head_w(p['wv']), head_w(p['wt'])],
                            axis=-1).astype(jnp.bfloat16)

    wi_t = p['wi'].T                                  # (hf+1, M*hf)
    wie = wi_t[:hf, :].astype(jnp.bfloat16)           # E-part of fc_i
    wit = wi_t[hf:hf + 1, :]                          # timespan-part of fc_i (f32)
    bi = p['bi'].reshape(1, M * hf)
    scale = jnp.exp(p['scale_i']).reshape(1, M)       # hoisted exp(scale_i)
    iscale = jnp.exp(-p['scale_i']).reshape(1, M)     # hoisted 1/exp(scale_i)

    # block-diagonal layout of weight_i for a single (M*hf, M) matmul (bf16)
    wblk = jnp.zeros((M * hf, M), jnp.float32)
    for m in range(M):
        wblk = wblk.at[m * hf:(m + 1) * hf, m].set(p['weight_i'][m])
    wblk = wblk.astype(jnp.bfloat16)

    x_bf = nfeat.astype(jnp.bfloat16)                       # (B, S, F)
    t3 = tfeat.reshape(B, S, 1)                             # (B, S, 1) f32
    # additive attention bias: 0 where visible, -2^32+1 where masked (bf16)
    neg = jnp.float32(-2.0 ** 32 + 1)
    bias_hb = ((attention_masks == 0.0).astype(jnp.float32) * neg
               ).reshape(H, B, S, S).astype(jnp.bfloat16)   # torch row g = h*B + b

    Bt = _pick_batch_fold(B, S, F, hf, M, dense=not marks_per_key)
    nb = B // Bt

    if marks_per_key:
        # rank-1 along the query axis: stream only (H, B, S, M)
        em_hb = event_marks[:, 0, :, :].reshape(H, B, S, M).astype(jnp.bfloat16)
        em_spec = pl.BlockSpec((1, Bt, S, M), lambda h, bb: (h, bb, 0, 0))
    else:
        # general marks: lane-dense (H, B, M, S, S) layout
        em_hb = (event_marks.reshape(H, B, S, S, M)
                 .transpose(0, 1, 4, 2, 3).astype(jnp.bfloat16))
        em_spec = pl.BlockSpec((1, Bt, M, S, S), lambda h, bb: (h, bb, 0, 0, 0))

    kernel = functools.partial(aia_head_kernel, hf=hf, M=M, num_units=U,
                               per_key=marks_per_key)
    attn_raw, inty_out = pl.pallas_call(
        kernel,
        out_shape=(jax.ShapeDtypeStruct((B, S, U), jnp.bfloat16),
                   jax.ShapeDtypeStruct((H, B, S, M), jnp.float32)),
        grid=(H, nb),                 # head outermost: wqkvt resident across bb
        in_specs=[
            pl.BlockSpec((Bt, S, F), lambda h, bb: (bb, 0, 0)),          # x
            pl.BlockSpec((Bt, S, 1), lambda h, bb: (bb, 0, 0)),          # timespans
            pl.BlockSpec((1, Bt, S, S), lambda h, bb: (h, bb, 0, 0)),    # additive mask bias
            em_spec,                                                     # event marks
            pl.BlockSpec((1, F, 4 * hf), lambda h, bb: (h, 0, 0)),       # fused QKVT weights
            pl.BlockSpec((hf, M * hf), lambda h, bb: (0, 0)),            # wie
            pl.BlockSpec((1, M * hf), lambda h, bb: (0, 0)),             # wit
            pl.BlockSpec((1, M * hf), lambda h, bb: (0, 0)),             # bi
            pl.BlockSpec((M * hf, M), lambda h, bb: (0, 0)),             # block-diag weight_i
            pl.BlockSpec((1, M), lambda h, bb: (0, 0)),                  # exp(scale_i)
            pl.BlockSpec((1, M), lambda h, bb: (0, 0)),                  # 1/exp(scale_i)
        ],
        out_specs=(
            pl.BlockSpec((Bt, S, hf), lambda h, bb: (bb, 0, h)),         # direct (B,S,U) write
            pl.BlockSpec((1, Bt, S, M), lambda h, bb: (h, bb, 0, 0)),
        ),
        compiler_params=pltpu.CompilerParams(
            dimension_semantics=("parallel", "parallel"),
            vmem_limit_bytes=48 * 1024 * 1024),    # headroom on v7x (64 MiB physical)
    )(x_bf, t3, bias_hb, em_hb, wqkvt, wie, wit, bi, wblk, scale, iscale)

    all_mark_inty = inty_out.reshape(H * B, S, M)

    # FFN / LayerNorm block, row-tiled over B*S; weights stay resident.
    rows = B * S
    TM = _row_tile(rows, _max_row_tile())
    x2 = attn_raw.reshape(rows, U)                             # bf16 intermediate
    res = nfeat[..., :U].reshape(rows, U)                      # f32 residual anchor
    row_spec = pl.BlockSpec((TM, U), lambda i: (i, 0))
    const2 = lambda shp: pl.BlockSpec(shp, lambda i: (0, 0))
    out = pl.pallas_call(
        ffn_ln_kernel,
        out_shape=jax.ShapeDtypeStruct((rows, U), jnp.float32),
        grid=(rows // TM,),
        in_specs=[
            row_spec, row_spec,
            const2((U, U)), const2((1, U)), const2((1, U)), const2((1, U)),
            const2((U, 2 * U)), const2((1, 2 * U)),
            const2((2 * U, U)), const2((1, U)), const2((1, U)), const2((1, U)),
        ],
        out_specs=pl.BlockSpec((TM, U), lambda i: (i, 0)),
        compiler_params=pltpu.CompilerParams(
            dimension_semantics=("parallel",),
            vmem_limit_bytes=48 * 1024 * 1024),
    )(x2, res,
      p['w_before'].T.astype(jnp.bfloat16), p['b_before'].reshape(1, U),
      p['g1'].reshape(1, U), p['be1'].reshape(1, U),
      p['w_inter'].T.astype(jnp.bfloat16), p['b_inter'].reshape(1, 2 * U),
      p['w_after'].T.astype(jnp.bfloat16), p['b_after'].reshape(1, U),
      p['g2'].reshape(1, U), p['be2'].reshape(1, U))

    return out.reshape(B, S, U), all_mark_inty


# ----------------------------------------------------------------------------
# Deterministic parameter init (matches shapes of the PyTorch module)
# ----------------------------------------------------------------------------
def init_params(key, in_feats, out_feats, num_heads, num_marks):
    hf = out_feats // num_heads
    ks = jax.random.split(key, 13)
    std = 0.02
    nrm = lambda k, s: std * jax.random.normal(k, s, jnp.float32)
    uni = lambda k, s, b: jax.random.uniform(k, s, jnp.float32, -b, b)
    p = {}
    p['wq'] = nrm(ks[0], (out_feats, in_feats))
    p['wk'] = nrm(ks[1], (out_feats, in_feats))
    p['wv'] = nrm(ks[2], (out_feats, in_feats))
    p['wt'] = nrm(ks[3], (out_feats, in_feats))
    p['wi'] = nrm(ks[4], (hf * num_marks, hf + 1))
    p['bi'] = uni(ks[5], (hf * num_marks,), 1.0 / math.sqrt(hf + 1))
    p['weight_i'] = uni(ks[6], (num_marks, hf), 1.0 / math.sqrt(hf))  # kaiming_uniform(a=sqrt(5))
    p['scale_i'] = jnp.zeros((num_marks,), jnp.float32)
    bu = 1.0 / math.sqrt(out_feats)
    p['w_before'] = uni(ks[7], (out_feats, out_feats), bu)
    p['b_before'] = uni(ks[8], (out_feats,), bu)
    p['g1'] = jnp.ones((out_feats,), jnp.float32)
    p['be1'] = jnp.zeros((out_feats,), jnp.float32)
    p['w_inter'] = uni(ks[9], (2 * out_feats, out_feats), bu)
    p['b_inter'] = uni(ks[10], (2 * out_feats,), bu)
    b2u = 1.0 / math.sqrt(2 * out_feats)
    p['w_after'] = uni(ks[11], (out_feats, 2 * out_feats), b2u)
    p['b_after'] = uni(ks[12], (out_feats,), b2u)
    p['g2'] = jnp.ones((out_feats,), jnp.float32)
    p['be2'] = jnp.zeros((out_feats,), jnp.float32)
    return p


# ----------------------------------------------------------------------------
# Pure-JAX f32 reference (mirrors the torch code) for a correctness check
# ----------------------------------------------------------------------------
def reference(nfeat, tfeat, attn_mask, event_marks, p, H, M):
    B, S, F = nfeat.shape
    U = p['wq'].shape[0]
    hf = U // H
    Q = nfeat @ p['wq'].T
    K = nfeat @ p['wk'].T
    V = nfeat @ p['wv'].T
    T = nfeat @ p['wt'].T
    sh = lambda X: jnp.concatenate(jnp.split(X, H, axis=2), axis=0)
    Q_, K_, V_, T_ = sh(Q), sh(K), sh(V), sh(T)
    outs = jnp.einsum('bqd,bkd->bqk', Q_, K_) / math.sqrt(U)
    outs = jnp.where(attn_mask == 0.0, -2.0 ** 32 + 1, outs)
    outs = jax.nn.softmax(outs, axis=2)
    E_ = jnp.einsum('bqk,bkd->bqd', outs, T_)
    ts = jnp.tile(tfeat[..., None], (H, 1, 1))
    mu = jax.nn.sigmoid(jnp.concatenate([E_, ts], axis=2) @ p['wi'].T + p['bi'])
    scale = jnp.exp(p['scale_i'])
    intys = []
    for m in range(M):
        mu_m = mu[:, :, m * hf:(m + 1) * hf]
        r = jnp.einsum('gsh,h->gs', mu_m, p['weight_i'][m]) / scale[m]
        intys.append(scale[m] * jnp.log(1.0 + jnp.exp(r)))
    all_mark_inty = jnp.stack(intys, axis=2)
    mark_inty = jnp.sum(all_mark_inty[:, :, None, :] * event_marks, axis=-1)
    outs = outs * mark_inty
    outs = jnp.einsum('bqk,bkd->bqd', outs, V_)
    outs = jnp.concatenate(jnp.split(outs, H, axis=0), axis=2)
    outs = outs + nfeat[..., :U]
    x = outs @ p['w_before'].T + p['b_before'] + nfeat[..., :U]
    x = _layernorm(x, p['g1'], p['be1'])
    z = jax.nn.gelu(x @ p['w_inter'].T + p['b_inter'], approximate=False)
    z = z @ p['w_after'].T + p['b_after'] + x
    return _layernorm(z, p['g2'], p['be2']), all_mark_inty


if __name__ == "__main__":
    # hf = U/H = 128 so the direct (B,S,U) attention write is 128-lane aligned.
    B, S, F, U, H, M = 2, 16, 256, 256, 2, 3
    key = jax.random.PRNGKey(0)
    kp, k1, k2, k3 = jax.random.split(key, 4)
    params = init_params(kp, F, U, H, M)

    nfeat = jax.random.normal(k1, (B, S, F), jnp.float32)
    tfeat = jax.random.uniform(k2, (B, S), jnp.float32, 0.0, 1.0)
    attention_masks = jnp.broadcast_to(jnp.tril(jnp.ones((S, S), jnp.float32)),
                                       (B * H, S, S))
    marks = jax.random.randint(k3, (B * H, S), 0, M)
    onehot = jax.nn.one_hot(marks, M, dtype=jnp.float32)          # (B*H, S, M)
    event_marks = jnp.broadcast_to(onehot[:, None, :, :], (B * H, S, S, M))

    ref_out, ref_inty = reference(nfeat, tfeat, attention_masks, event_marks,
                                  params, H, M)

    # general (dense event-mark) path -- exact torch semantics
    out_d, inty_d = ctsma_transformer(nfeat, tfeat, attention_masks, event_marks,
                                      params, H, M, marks_per_key=False)
    # rank-1 fast path -- valid here because the driver's marks are per-key
    out_k, inty_k = ctsma_transformer(nfeat, tfeat, attention_masks, event_marks,
                                      params, H, M, marks_per_key=True)
    out_d, inty_d, out_k, inty_k = jax.block_until_ready((out_d, inty_d, out_k, inty_k))

    assert out_d.shape == (B, S, U) and inty_d.shape == (B * H, S, M)
    # bf16 matmul operands / bf16 attention intermediate vs f32 reference
    for o, i in ((out_d, inty_d), (out_k, inty_k)):
        assert np.allclose(np.asarray(o), np.asarray(ref_out), atol=3e-2, rtol=3e-2)
        assert np.allclose(np.asarray(i), np.asarray(ref_inty), atol=3e-2, rtol=3e-2)
    print("KERNEL_OK")
</pallas_src>

<mosaic_0001>
module attributes {stable_mosaic.version = 11 : i64} {
  func.func @aia_head_kernel(%arg0: i32, %arg1: i32, %arg2: memref<2x16x256xbf16, #tpu.memory_space<vmem>>, %arg3: memref<2x16x1xf32, #tpu.memory_space<vmem>>, %arg4: memref<1x2x16x16xbf16, #tpu.memory_space<vmem>>, %arg5: memref<1x2x3x16x16xbf16, #tpu.memory_space<vmem>>, %arg6: memref<1x256x512xbf16, #tpu.memory_space<vmem>>, %arg7: memref<128x384xbf16, #tpu.memory_space<vmem>>, %arg8: memref<1x384xf32, #tpu.memory_space<vmem>>, %arg9: memref<1x384xf32, #tpu.memory_space<vmem>>, %arg10: memref<384x3xbf16, #tpu.memory_space<vmem>>, %arg11: memref<1x3xf32, #tpu.memory_space<vmem>>, %arg12: memref<1x3xf32, #tpu.memory_space<vmem>>, %arg13: memref<2x16x128xbf16, #tpu.memory_space<vmem>>, %arg14: memref<1x2x16x3xf32, #tpu.memory_space<vmem>>) attributes {dimension_semantics = [#tpu.dimension_semantics<parallel>, #tpu.dimension_semantics<parallel>], iteration_bounds = array<i64: 2, 1>, scalar_prefetch = 0 : i64, scratch_operands = 0 : i64, tpu.core_type = #tpu.core_type<tc>, window_params = [{transform_indices = @transform_0, window_bounds = array<i64: 2, 16, 256>}, {transform_indices = @transform_1, window_bounds = array<i64: 2, 16, 1>}, {transform_indices = @transform_2, window_bounds = array<i64: 1, 2, 16, 16>}, {transform_indices = @transform_3, window_bounds = array<i64: 1, 2, 3, 16, 16>}, {transform_indices = @transform_4, window_bounds = array<i64: 1, 256, 512>}, {pipeline_mode = #tpu.pipeline_mode<synchronous>, transform_indices = @transform_5, window_bounds = array<i64: 128, 384>}, {pipeline_mode = #tpu.pipeline_mode<synchronous>, transform_indices = @transform_6, window_bounds = array<i64: 1, 384>}, {pipeline_mode = #tpu.pipeline_mode<synchronous>, transform_indices = @transform_7, window_bounds = array<i64: 1, 384>}, {pipeline_mode = #tpu.pipeline_mode<synchronous>, transform_indices = @transform_8, window_bounds = array<i64: 384, 3>}, {pipeline_mode = #tpu.pipeline_mode<synchronous>, transform_indices = @transform_9, window_bounds = array<i64: 1, 3>}, {pipeline_mode = #tpu.pipeline_mode<synchronous>, transform_indices = @transform_10, window_bounds = array<i64: 1, 3>}, {transform_indices = @transform_11, window_bounds = array<i64: 2, 16, 128>}, {transform_indices = @transform_12, window_bounds = array<i64: 1, 2, 16, 3>}]} {
    %c0 = arith.constant 0 : index
    %c0_0 = arith.constant 0 : index
    %c0_1 = arith.constant 0 : index
    %0 = vector.load %arg2[%c0, %c0_0, %c0_1] : memref<2x16x256xbf16, #tpu.memory_space<vmem>>, vector<2x16x256xbf16>
    %1 = vector.shape_cast %0 : vector<2x16x256xbf16> to vector<32x256xbf16>
    %c0_2 = arith.constant 0 : index
    %c0_3 = arith.constant 0 : index
    %c0_4 = arith.constant 0 : index
    %2 = vector.load %arg6[%c0_2, %c0_3, %c0_4] : memref<1x256x512xbf16, #tpu.memory_space<vmem>>, vector<1x256x512xbf16>
    %3 = vector.shape_cast %2 : vector<1x256x512xbf16> to vector<256x512xbf16>
    %cst = arith.constant dense<0.000000e+00> : vector<32x512xf32>
    %4 = tpu.matmul %1, %3, %cst {dimension_numbers = #tpu.dot_dimension_numbers<[1], [0], [0], [1], [0, 0, 1, 1], [], []>} : vector<32x256xbf16>, vector<256x512xbf16>, vector<32x512xf32> -> vector<32x512xf32>
    %5 = vector.extract_strided_slice %4 {offsets = [0, 0], sizes = [32, 128], strides = [1, 1]} : vector<32x512xf32> to vector<32x128xf32>
    %6 = vector.shape_cast %5 : vector<32x128xf32> to vector<2x16x128xf32>
    %7 = arith.truncf %6 : vector<2x16x128xf32> to vector<2x16x128xbf16>
    %8 = vector.extract_strided_slice %4 {offsets = [0, 128], sizes = [32, 128], strides = [1, 1]} : vector<32x512xf32> to vector<32x128xf32>
    %9 = vector.shape_cast %8 : vector<32x128xf32> to vector<2x16x128xf32>
    %10 = arith.truncf %9 : vector<2x16x128xf32> to vector<2x16x128xbf16>
    %11 = vector.extract_strided_slice %4 {offsets = [0, 256], sizes = [32, 128], strides = [1, 1]} : vector<32x512xf32> to vector<32x128xf32>
    %12 = vector.shape_cast %11 : vector<32x128xf32> to vector<2x16x128xf32>
    %13 = arith.truncf %12 : vector<2x16x128xf32> to vector<2x16x128xbf16>
    %14 = vector.extract_strided_slice %4 {offsets = [0, 384], sizes = [32, 128], strides = [1, 1]} : vector<32x512xf32> to vector<32x128xf32>
    %15 = vector.shape_cast %14 : vector<32x128xf32> to vector<2x16x128xf32>
    %16 = arith.truncf %15 : vector<2x16x128xf32> to vector<2x16x128xbf16>
    "tpu.trace_start"() <{level = 10 : i32, message = "bqd,bkd->bqk"}> : () -> ()
    %cst_5 = arith.constant dense<0.000000e+00> : vector<2x16x16xf32>
    %17 = tpu.matmul %7, %10, %cst_5 {dimension_numbers = #tpu.dot_dimension_numbers<[2], [2], [1], [1], [0, 0, 0, 1, 1, 1], [0], [0]>} : vector<2x16x128xbf16>, vector<2x16x128xbf16>, vector<2x16x16xf32> -> vector<2x16x16xf32>
    "tpu.trace_stop"() : () -> ()
    %cst_6 = arith.constant 6.250000e-02 : f32
    %18 = vector.broadcast %cst_6 : f32 to vector<2x16x16xf32>
    %19 = arith.mulf %17, %18 : vector<2x16x16xf32>
    %c0_7 = arith.constant 0 : index
    %c0_8 = arith.constant 0 : index
    %c0_9 = arith.constant 0 : index
    %c0_10 = arith.constant 0 : index
    %20 = vector.load %arg4[%c0_7, %c0_8, %c0_9, %c0_10] : memref<1x2x16x16xbf16, #tpu.memory_space<vmem>>, vector<1x2x16x16xbf16>
    %21 = vector.shape_cast %20 : vector<1x2x16x16xbf16> to vector<2x16x16xbf16>
    %22 = arith.extf %21 : vector<2x16x16xbf16> to vector<2x16x16xf32>
    %23 = arith.addf %19, %22 : vector<2x16x16xf32>
    %cst_11 = arith.constant dense<0xFF800000> : vector<2x16xf32>
    %24 = vector.multi_reduction <maximumf>, %23, %cst_11 [2] : vector<2x16x16xf32> to vector<2x16xf32>
    %25 = vector.shape_cast %24 : vector<2x16xf32> to vector<2x16x1xf32>
    %26 = vector.broadcast %25 : vector<2x16x1xf32> to vector<2x16x16xf32>
    %27 = arith.subf %23, %26 : vector<2x16x16xf32>
    %28 = math.exp %27 : vector<2x16x16xf32>
    %cst_12 = arith.constant dense<0.000000e+00> : vector<2x16xf32>
    %29 = vector.multi_reduction <add>, %28, %cst_12 [2] : vector<2x16x16xf32> to vector<2x16xf32>
    %30 = vector.shape_cast %29 : vector<2x16xf32> to vector<2x16x1xf32>
    %31 = tpu.reciprocal %30 {approx = true} : vector<2x16x1xf32> -> vector<2x16x1xf32>
    %32 = vector.broadcast %31 : vector<2x16x1xf32> to vector<2x16x16xf32>
    %33 = arith.mulf %28, %32 : vector<2x16x16xf32>
    %34 = arith.truncf %33 : vector<2x16x16xf32> to vector<2x16x16xbf16>
    "tpu.trace_start"() <{level = 10 : i32, message = "bqk,bkd->bqd"}> : () -> ()
    %cst_13 = arith.constant dense<0.000000e+00> : vector<2x16x128xf32>
    %35 = tpu.matmul %34, %16, %cst_13 {dimension_numbers = #tpu.dot_dimension_numbers<[2], [1], [1], [2], [0, 0, 0, 1, 1, 2], [0], [0]>} : vector<2x16x16xbf16>, vector<2x16x128xbf16>, vector<2x16x128xf32> -> vector<2x16x128xf32>
    "tpu.trace_stop"() : () -> ()
    %36 = vector.shape_cast %35 : vector<2x16x128xf32> to vector<32x128xf32>
    %37 = arith.truncf %36 : vector<32x128xf32> to vector<32x128xbf16>
    %c0_14 = arith.constant 0 : index
    %c0_15 = arith.constant 0 : index
    %38 = vector.load %arg7[%c0_14, %c0_15] : memref<128x384xbf16, #tpu.memory_space<vmem>>, vector<128x384xbf16>
    %cst_16 = arith.constant dense<0.000000e+00> : vector<32x384xf32>
    %39 = tpu.matmul %37, %38, %cst_16 {dimension_numbers = #tpu.dot_dimension_numbers<[1], [0], [0], [1], [0, 0, 1, 1], [], []>} : vector<32x128xbf16>, vector<128x384xbf16>, vector<32x384xf32> -> vector<32x384xf32>
    %c0_17 = arith.constant 0 : index
    %c0_18 = arith.constant 0 : index
    %c0_19 = arith.constant 0 : index
    %40 = vector.load %arg3[%c0_17, %c0_18, %c0_19] : memref<2x16x1xf32, #tpu.memory_space<vmem>>, vector<2x16x1xf32>
    %41 = vector.shape_cast %40 : vector<2x16x1xf32> to vector<32x1xf32>
    %c0_20 = arith.constant 0 : index
    %c0_21 = arith.constant 0 : index
    %42 = vector.load %arg8[%c0_20, %c0_21] : memref<1x384xf32, #tpu.memory_space<vmem>>, vector<1x384xf32>
    %43 = vector.broadcast %41 : vector<32x1xf32> to vector<32x384xf32>
    %44 = vector.broadcast %42 : vector<1x384xf32> to vector<32x384xf32>
    %45 = arith.mulf %43, %44 : vector<32x384xf32>
    %46 = arith.addf %39, %45 : vector<32x384xf32>
    %c0_22 = arith.constant 0 : index
    %c0_23 = arith.constant 0 : index
    %47 = vector.load %arg9[%c0_22, %c0_23] : memref<1x384xf32, #tpu.memory_space<vmem>>, vector<1x384xf32>
    %48 = vector.broadcast %47 : vector<1x384xf32> to vector<32x384xf32>
    %49 = arith.addf %46, %48 : vector<32x384xf32>
    %50 = arith.negf %49 : vector<32x384xf32>
    %51 = math.exp %50 : vector<32x384xf32>
    %cst_24 = arith.constant 1.000000e+00 : f32
    %52 = vector.broadcast %cst_24 : f32 to vector<32x384xf32>
    %53 = arith.addf %52, %51 : vector<32x384xf32>
    %54 = arith.divf %52, %53 : vector<32x384xf32>
    %55 = arith.truncf %54 : vector<32x384xf32> to vector<32x384xbf16>
    %c0_25 = arith.constant 0 : index
    %c0_26 = arith.constant 0 : index
    %56 = vector.load %arg10[%c0_25, %c0_26] : memref<384x3xbf16, #tpu.memory_space<vmem>>, vector<384x3xbf16>
    %cst_27 = arith.constant dense<0.000000e+00> : vector<32x3xf32>
    %57 = tpu.matmul %55, %56, %cst_27 {dimension_numbers = #tpu.dot_dimension_numbers<[1], [0], [0], [1], [0, 0, 1, 1], [], []>} : vector<32x384xbf16>, vector<384x3xbf16>, vector<32x3xf32> -> vector<32x3xf32>
    %c0_28 = arith.constant 0 : index
    %c0_29 = arith.constant 0 : index
    %58 = vector.load %arg12[%c0_28, %c0_29] : memref<1x3xf32, #tpu.memory_space<vmem>>, vector<1x3xf32>
    %59 = vector.broadcast %58 : vector<1x3xf32> to vector<32x3xf32>
    %60 = arith.mulf %57, %59 : vector<32x3xf32>
    %cst_30 = arith.constant 0.000000e+00 : f32
    %61 = vector.broadcast %cst_30 : f32 to vector<32x3xf32>
    %62 = arith.maximumf %60, %61 : vector<32x3xf32>
    %63 = math.absf %60 : vector<32x3xf32>
    %cst_31 = arith.constant 0.000000e+00 : f32
    %64 = vector.broadcast %cst_31 : f32 to vector<32x3xf32>
    %65 = arith.subf %64, %63 : vector<32x3xf32>
    %66 = math.exp %65 : vector<32x3xf32>
    %cst_32 = arith.constant 1.000000e+00 : f32
    %67 = vector.broadcast %cst_32 : f32 to vector<32x3xf32>
    %68 = arith.addf %67, %66 : vector<32x3xf32>
    %69 = math.log %68 : vector<32x3xf32>
    %70 = arith.addf %62, %69 : vector<32x3xf32>
    %c0_33 = arith.constant 0 : index
    %c0_34 = arith.constant 0 : index
    %71 = vector.load %arg11[%c0_33, %c0_34] : memref<1x3xf32, #tpu.memory_space<vmem>>, vector<1x3xf32>
    %72 = vector.broadcast %71 : vector<1x3xf32> to vector<32x3xf32>
    %73 = arith.mulf %72, %70 : vector<32x3xf32>
    %74 = vector.shape_cast %73 : vector<32x3xf32> to vector<2x16x3xf32>
    %c0_35 = arith.constant 0 : index
    %c0_36 = arith.constant 0 : index
    %c0_37 = arith.constant 0 : index
    %c0_38 = arith.constant 0 : index
    %75 = vector.load %arg14[%c0_35, %c0_36, %c0_37, %c0_38] : memref<1x2x16x3xf32, #tpu.memory_space<vmem>>, vector<1x2x16x3xf32>
    %76 = vector.shape_cast %75 : vector<1x2x16x3xf32> to vector<2x16x3xf32>
    %77 = vector.shape_cast %74 : vector<2x16x3xf32> to vector<1x2x16x3xf32>
    tpu.vector_store %arg14[%c0_35, %c0_36, %c0_37, %c0_38], %77 {strides = array<i32>} : memref<1x2x16x3xf32, #tpu.memory_space<vmem>>, vector<1x2x16x3xf32>,
    %c0_39 = arith.constant 0 : index
    %c0_40 = arith.constant 0 : index
    %c0_41 = arith.constant 0 : index
    %c0_42 = arith.constant 0 : index
    %c0_43 = arith.constant 0 : index
    %78 = vector.load %arg5[%c0_39, %c0_40, %c0_41, %c0_42, %c0_43] : memref<1x2x3x16x16xbf16, #tpu.memory_space<vmem>>, vector<1x2x3x16x16xbf16>
    %79 = vector.shape_cast %78 : vector<1x2x3x16x16xbf16> to vector<2x3x16x16xbf16>
    %80 = vector.extract_strided_slice %74 {offsets = [0, 0, 0], sizes = [2, 16, 1], strides = [1, 1, 1]} : vector<2x16x3xf32> to vector<2x16x1xf32>
    %81 = vector.extract_strided_slice %79 {offsets = [0, 0, 0, 0], sizes = [2, 1, 16, 16], strides = [1, 1, 1, 1]} : vector<2x3x16x16xbf16> to vector<2x1x16x16xbf16>
    %82 = vector.shape_cast %81 : vector<2x1x16x16xbf16> to vector<2x16x16xbf16>
    %83 = arith.extf %82 : vector<2x16x16xbf16> to vector<2x16x16xf32>
    %84 = vector.broadcast %80 : vector<2x16x1xf32> to vector<2x16x16xf32>
    %85 = arith.mulf %84, %83 : vector<2x16x16xf32>
    %86 = vector.extract_strided_slice %74 {offsets = [0, 0, 1], sizes = [2, 16, 1], strides = [1, 1, 1]} : vector<2x16x3xf32> to vector<2x16x1xf32>
    %87 = vector.extract_strided_slice %79 {offsets = [0, 1, 0, 0], sizes = [2, 1, 16, 16], strides = [1, 1, 1, 1]} : vector<2x3x16x16xbf16> to vector<2x1x16x16xbf16>
    %88 = vector.shape_cast %87 : vector<2x1x16x16xbf16> to vector<2x16x16xbf16>
    %89 = arith.extf %88 : vector<2x16x16xbf16> to vector<2x16x16xf32>
    %90 = vector.broadcast %86 : vector<2x16x1xf32> to vector<2x16x16xf32>
    %91 = arith.mulf %90, %89 : vector<2x16x16xf32>
    %92 = arith.addf %85, %91 : vector<2x16x16xf32>
    %93 = vector.extract_strided_slice %74 {offsets = [0, 0, 2], sizes = [2, 16, 1], strides = [1, 1, 1]} : vector<2x16x3xf32> to vector<2x16x1xf32>
    %94 = vector.extract_strided_slice %79 {offsets = [0, 2, 0, 0], sizes = [2, 1, 16, 16], strides = [1, 1, 1, 1]} : vector<2x3x16x16xbf16> to vector<2x1x16x16xbf16>
    %95 = vector.shape_cast %94 : vector<2x1x16x16xbf16> to vector<2x16x16xbf16>
    %96 = arith.extf %95 : vector<2x16x16xbf16> to vector<2x16x16xf32>
    %97 = vector.broadcast %93 : vector<2x16x1xf32> to vector<2x16x16xf32>
    %98 = arith.mulf %97, %96 : vector<2x16x16xf32>
    %99 = arith.addf %92, %98 : vector<2x16x16xf32>
    %100 = arith.mulf %33, %99 : vector<2x16x16xf32>
    %101 = arith.truncf %100 : vector<2x16x16xf32> to vector<2x16x16xbf16>
    "tpu.trace_start"() <{level = 10 : i32, message = "bqk,bkd->bqd"}> : () -> ()
    %cst_44 = arith.constant dense<0.000000e+00> : vector<2x16x128xf32>
    %102 = tpu.matmul %101, %13, %cst_44 {dimension_numbers = #tpu.dot_dimension_numbers<[2], [1], [1], [2], [0, 0, 0, 1, 1, 2], [0], [0]>} : vector<2x16x16xbf16>, vector<2x16x128xbf16>, vector<2x16x128xf32> -> vector<2x16x128xf32>
    "tpu.trace_stop"() : () -> ()
    %103 = arith.truncf %102 : vector<2x16x128xf32> to vector<2x16x128xbf16>
    %c0_45 = arith.constant 0 : index
    %c0_46 = arith.constant 0 : index
    %c0_47 = arith.constant 0 : index
    %104 = vector.load %arg13[%c0_45, %c0_46, %c0_47] : memref<2x16x128xbf16, #tpu.memory_space<vmem>>, vector<2x16x128xbf16>
    tpu.vector_store %arg13[%c0_45, %c0_46, %c0_47], %103 {strides = array<i32>} : memref<2x16x128xbf16, #tpu.memory_space<vmem>>, vector<2x16x128xbf16>,
    return
  }
  func.func @transform_0(%arg0: i32, %arg1: i32) -> (i32, i32, i32) {
    %c0_i32 = arith.constant 0 : i32
    %c0_i32_0 = arith.constant 0 : i32
    %c0_i32_1 = arith.constant 0 : i32
    return %arg1, %c0_i32, %c0_i32_0 : i32, i32, i32
  }
  func.func @transform_1(%arg0: i32, %arg1: i32) -> (i32, i32, i32) {
    %c0_i32 = arith.constant 0 : i32
    %c0_i32_0 = arith.constant 0 : i32
    %c0_i32_1 = arith.constant 0 : i32
    return %arg1, %c0_i32, %c0_i32_0 : i32, i32, i32
  }
  func.func @transform_2(%arg0: i32, %arg1: i32) -> (i32, i32, i32, i32) {
    %c0_i32 = arith.constant 0 : i32
    %c0_i32_0 = arith.constant 0 : i32
    %c0_i32_1 = arith.constant 0 : i32
    return %arg0, %arg1, %c0_i32, %c0_i32_0 : i32, i32, i32, i32
  }
  func.func @transform_3(%arg0: i32, %arg1: i32) -> (i32, i32, i32, i32, i32) {
    %c0_i32 = arith.constant 0 : i32
    %c0_i32_0 = arith.constant 0 : i32
    %c0_i32_1 = arith.constant 0 : i32
    %c0_i32_2 = arith.constant 0 : i32
    return %arg0, %arg1, %c0_i32, %c0_i32_0, %c0_i32_1 : i32, i32, i32, i32, i32
  }
  func.func @transform_4(%arg0: i32, %arg1: i32) -> (i32, i32, i32) {
    %c0_i32 = arith.constant 0 : i32
    %c0_i32_0 = arith.constant 0 : i32
    %c0_i32_1 = arith.constant 0 : i32
    return %arg0, %c0_i32, %c0_i32_0 : i32, i32, i32
  }
  func.func @transform_5(%arg0: i32, %arg1: i32) -> (i32, i32) {
    %c0_i32 = arith.constant 0 : i32
    %c0_i32_0 = arith.constant 0 : i32
    %c0_i32_1 = arith.constant 0 : i32
    return %c0_i32, %c0_i32_0 : i32, i32
  }
  func.func @transform_6(%arg0: i32, %arg1: i32) -> (i32, i32) {
    %c0_i32 = arith.constant 0 : i32
    %c0_i32_0 = arith.constant 0 : i32
    %c0_i32_1 = arith.constant 0 : i32
    return %c0_i32, %c0_i32_0 : i32, i32
  }
  func.func @transform_7(%arg0: i32, %arg1: i32) -> (i32, i32) {
    %c0_i32 = arith.constant 0 : i32
    %c0_i32_0 = arith.constant 0 : i32
    %c0_i32_1 = arith.constant 0 : i32
    return %c0_i32, %c0_i32_0 : i32, i32
  }
  func.func @transform_8(%arg0: i32, %arg1: i32) -> (i32, i32) {
    %c0_i32 = arith.constant 0 : i32
    %c0_i32_0 = arith.constant 0 : i32
    %c0_i32_1 = arith.constant 0 : i32
    return %c0_i32, %c0_i32_0 : i32, i32
  }
  func.func @transform_9(%arg0: i32, %arg1: i32) -> (i32, i32) {
    %c0_i32 = arith.constant 0 : i32
    %c0_i32_0 = arith.constant 0 : i32
    %c0_i32_1 = arith.constant 0 : i32
    return %c0_i32, %c0_i32_0 : i32, i32
  }
  func.func @transform_10(%arg0: i32, %arg1: i32) -> (i32, i32) {
    %c0_i32 = arith.constant 0 : i32
    %c0_i32_0 = arith.constant 0 : i32
    %c0_i32_1 = arith.constant 0 : i32
    return %c0_i32, %c0_i32_0 : i32, i32
  }
  func.func @transform_11(%arg0: i32, %arg1: i32) -> (i32, i32, i32) {
    %c0_i32 = arith.constant 0 : i32
    %c0_i32_0 = arith.constant 0 : i32
    return %arg1, %c0_i32, %arg0 : i32, i32, i32
  }
  func.func @transform_12(%arg0: i32, %arg1: i32) -> (i32, i32, i32, i32) {
    %c0_i32 = arith.constant 0 : i32
    %c0_i32_0 = arith.constant 0 : i32
    %c0_i32_1 = arith.constant 0 : i32
    return %arg0, %arg1, %c0_i32, %c0_i32_0 : i32, i32, i32, i32
  }
}

</mosaic_0001>

<llo_original>
// kernel: tpu_custom_call.1
$region0: #{tpu_custom_call.1}
  #allocation0 [shape = 'u32[]', space=smem, size = 0x4, offset = 0x4, fixed_abs, tag = 'smem constant byte address 0x4 - core index']
  #allocation1 [shape = 'u32[144,128]{1,0:T(1,128)}', space=vmem, size = 0x12000, scoped, tag = 'internal scratch']
  %s0 = inlined_call_operand.vmem [shape: bf16[2,16,256], index: 0, kind: input, shape index: {}]
  %s1 = inlined_call_operand.vmem [shape: f32[2,16,1], index: 1, kind: input, shape index: {}]
  %s2 = inlined_call_operand.hbm [shape: bf16[2,2,16,16], index: 2, kind: input, shape index: {}]
  %s3 = inlined_call_operand.hbm [shape: bf16[2,2,3,16,16], index: 3, kind: input, shape index: {}]
  %s4 = inlined_call_operand.hbm [shape: bf16[2,256,512], index: 4, kind: input, shape index: {}]
  %s5 = inlined_call_operand.vmem [shape: bf16[128,384], index: 5, kind: input, shape index: {}]
  %s6 = inlined_call_operand.vmem [shape: f32[1,384], index: 6, kind: input, shape index: {}]
  %s7 = inlined_call_operand.vmem [shape: f32[1,384], index: 7, kind: input, shape index: {}]
  %s8 = inlined_call_operand.vmem [shape: bf16[384,3], index: 8, kind: input, shape index: {}]
  %s9 = inlined_call_operand.vmem [shape: f32[1,3], index: 9, kind: input, shape index: {}]
  %s10 = inlined_call_operand.vmem [shape: f32[1,3], index: 10, kind: input, shape index: {}]
  %s11 = inlined_call_operand.hbm [shape: bf16[2,16,256], index: 11, kind: output, shape index: {0}]
  %s12 = inlined_call_operand.vmem [shape: f32[2,2,16,3], index: 12, kind: output, shape index: {1}]
  %13 = xla_tuple %s11, %s12
  %s14 = sld [smem:[#allocation0]]
  $region97: #{tpu_custom_call.1} parent=0
    _
  %s16 = ssub.s32 1, %s14
  %s17 = scalar_select 0, %s16, %s14
  $region1: #{tpu_custom_call.1} parent=0
    #allocation2 [shape = 'u8[16384]{0}', space=vmem, size = 0x4000, scoped, tag = 'input window, operand 2']
    #allocation3 [shape = 's32[2]{0}', space=sflag, size = 0x8, scoped, tag = 'scoped memory for tpu_custom_call.1']
    #allocation4 [shape = 's32[2]{0}', space=sflag, size = 0x8, scoped, tag = 'scoped memory for tpu_custom_call.1']
    #allocation5 [shape = 'u8[49152]{0}', space=vmem, size = 0xc000, scoped, tag = 'input window, operand 3']
    #allocation6 [shape = 's32[2]{0}', space=sflag, size = 0x8, scoped, tag = 'scoped memory for tpu_custom_call.1']
    #allocation7 [shape = 'u8[524288]{0}', space=vmem, size = 0x80000, scoped, tag = 'input window, operand 4']
    #allocation8 [shape = 'u8[16384]{0}', space=vmem, size = 0x4000, scoped, tag = 'output window, operand 0']
    %18 = vsyncpa [#allocation3], 0
    %s19 = scalar_lea.sflag [#allocation3], 1
    %20 = vsyncpa %s19, 0
    %21 = vsyncpa [#allocation6], 0
    %s22 = scalar_lea.sflag [#allocation6], 1
    %23 = vsyncpa %s22, 0
    %24 = vsyncpa [#allocation4], 0
    %s25 = scalar_lea.sflag [#allocation4], 1
    %26 = vsyncpa %s25, 0
    loop: start=0, step=1, limit=4
    $region2: #{tpu_custom_call.1} parent=1 // loop_pre_header
      _
    $region3: #{tpu_custom_call.1} parent=1 // loop_header
      %s28 = sphi 0, %s32
      %p29 = scmp.ge.s32.totalorder %s28, 4
      %s35 = sphi 0, %s47
      %s36 = sphi 0, %s43
      %s37 = sphi 0, %s35
      %s38 = sphi 0, %s36
      %s39 = sphi 0, %s37
      %s40 = sphi 0, %s38
      %s50 = sphi 0, %s52
      %s53 = sphi 0, %s50
      %s54 = sphi 0, %s53
      %s70 = sphi 0, %s54
      %s76 = sphi 0, %s78
      %s79 = sphi 0, %s76
      %s80 = sphi 0, %s79
      %s96 = sphi 0, %s80
      %s104 = sphi 0, %s106
      %s107 = sphi 0, %s104
      %s108 = sphi 0, %s107
      %s124 = sphi 0, %s108
      %s132 = sphi 0, %s134
      %s135 = sphi 0, %s132
      %s136 = sphi 0, %s135
      %s152 = sphi 0, %s136
      %s158 = sphi 0, %s160
      %s161 = sphi 0, %s158
      %s162 = sphi 0, %s161
      %s178 = sphi 0, %s162
      %s182 = sphi 0, %s182
      %s184 = sphi 0, %s182
      %s185 = sphi 0, %s184
      %s199 = sphi 0, %s185
      %s203 = sphi 0, %s203
      %s205 = sphi 0, %s203
      %s206 = sphi 0, %s205
      %s220 = sphi 0, %s206
      %s224 = sphi 0, %s224
      %s226 = sphi 0, %s224
      %s227 = sphi 0, %s226
      %s241 = sphi 0, %s227
      %s245 = sphi 0, %s245
      %s247 = sphi 0, %s245
      %s248 = sphi 0, %s247
      %s262 = sphi 0, %s248
      %s266 = sphi 0, %s266
      %s268 = sphi 0, %s266
      %s269 = sphi 0, %s268
      %s283 = sphi 0, %s269
      %s287 = sphi 0, %s287
      %s289 = sphi 0, %s287
      %s290 = sphi 0, %s289
      %s304 = sphi 0, %s290
      %s312 = sphi 0, %s314
      %s315 = sphi 0, %s312
      %s316 = sphi 0, %s315
      %s332 = sphi 0, %s316
      %s340 = sphi 0, %s342
      %s343 = sphi 0, %s340
      %s344 = sphi 0, %s343
      %s360 = sphi 0, %s344
    $region4: #{tpu_custom_call.1} parent=1 // loop_header_branch
      %31 = sbr.rel (%p29) target = $region8
    $region5: #{tpu_custom_call.1} parent=1 // loop_body
      %s33 = ssub.s32 %s28, 1
      %s34 = ssub.s32 %s28, 2
      %s41 = sadd.s32 1, %s36
      %p42 = scmp.ge.s32.totalorder %s41, 1
      %s43 = scalar_select %p42, 0, %s41
      %s44 = sadd.s32 1, %s35
      %s45 = scalar_select %p42, %s44, %s35
      %p46 = scmp.ge.s32.totalorder %s45, 2
      %s47 = scalar_select %p46, 0, %s45
      %s48 = ssub.s32 %s36, %s43
      %p49 = scmp.eq.s32.totalorder %s48, 0
      %s51 = sadd.s32 %s50, 1
      %s52 = scalar_select %p49, %s50, %s51
      %p55 = pneg %p49
      %p56 = scmp.eq.s32.totalorder %s28, 1
      %p57 = por %p55, %p56
      %p58 = scmp.ne.s32.totalorder %s50, %s53
      %p59 = scmp.eq.s32.totalorder %s28, 0
      %p60 = por %p58, %p59
      %p61 = scmp.ne.s32.totalorder %s50, %s53
      %p62 = scmp.eq.s32.totalorder %s33, 1
      %p63 = por %p61, %p62
      %p64 = scmp.ne.s32.totalorder %s53, %s54
      %p65 = scmp.eq.s32.totalorder %s33, 0
      %p66 = por %p64, %p65
      %p67 = scmp.ne.s32.totalorder %s53, %s54
      %p68 = scmp.eq.s32.totalorder %s34, 1
      %p69 = por %p67, %p68
      %p71 = scmp.ne.s32.totalorder %s54, %s70
      %p72 = scmp.eq.s32.totalorder %s34, 0
      %p73 = por %p71, %p72
      %s74 = ssub.s32 %s36, %s43
      %p75 = scmp.eq.s32.totalorder %s74, 0
      %s77 = sadd.s32 %s76, 1
      %s78 = scalar_select %p75, %s76, %s77
      %p81 = pneg %p75
      %p82 = scmp.eq.s32.totalorder %s28, 1
      %p83 = por %p81, %p82
      %p84 = scmp.ne.s32.totalorder %s76, %s79
      %p85 = scmp.eq.s32.totalorder %s28, 0
      %p86 = por %p84, %p85
      %p87 = scmp.ne.s32.totalorder %s76, %s79
      %p88 = scmp.eq.s32.totalorder %s33, 1
      %p89 = por %p87, %p88
      %p90 = scmp.ne.s32.totalorder %s79, %s80
      %p91 = scmp.eq.s32.totalorder %s33, 0
      %p92 = por %p90, %p91
      %p93 = scmp.ne.s32.totalorder %s79, %s80
      %p94 = scmp.eq.s32.totalorder %s34, 1
      %p95 = por %p93, %p94
      %p97 = scmp.ne.s32.totalorder %s80, %s96
      %p98 = scmp.eq.s32.totalorder %s34, 0
      %p99 = por %p97, %p98
      %s100 = ssub.s32 %s35, %s47
      %s101 = ssub.s32 %s36, %s43
      %s102 = sor.u32 %s100, %s101
      %p103 = scmp.eq.s32.totalorder %s102, 0
      %s105 = sadd.s32 %s104, 1
      %s106 = scalar_select %p103, %s104, %s105
      %p109 = pneg %p103
      %p110 = scmp.eq.s32.totalorder %s28, 1
      %p111 = por %p109, %p110
      %p112 = scmp.ne.s32.totalorder %s104, %s107
      %p113 = scmp.eq.s32.totalorder %s28, 0
      %p114 = por %p112, %p113
      %p115 = scmp.ne.s32.totalorder %s104, %s107
      %p116 = scmp.eq.s32.totalorder %s33, 1
      %p117 = por %p115, %p116
      %p118 = scmp.ne.s32.totalorder %s107, %s108
      %p119 = scmp.eq.s32.totalorder %s33, 0
      %p120 = por %p118, %p119
      %p121 = scmp.ne.s32.totalorder %s107, %s108
      %p122 = scmp.eq.s32.totalorder %s34, 1
      %p123 = por %p121, %p122
      %p125 = scmp.ne.s32.totalorder %s108, %s124
      %p126 = scmp.eq.s32.totalorder %s34, 0
      %p127 = por %p125, %p126
      %s128 = ssub.s32 %s35, %s47
      %s129 = ssub.s32 %s36, %s43
      %s130 = sor.u32 %s128, %s129
      %p131 = scmp.eq.s32.totalorder %s130, 0
      %s133 = sadd.s32 %s132, 1
      %s134 = scalar_select %p131, %s132, %s133
      %p137 = pneg %p131
      %p138 = scmp.eq.s32.totalorder %s28, 1
      %p139 = por %p137, %p138
      %p140 = scmp.ne.s32.totalorder %s132, %s135
      %p141 = scmp.eq.s32.totalorder %s28, 0
      %p142 = por %p140, %p141
      %p143 = scmp.ne.s32.totalorder %s132, %s135
      %p144 = scmp.eq.s32.totalorder %s33, 1
      %p145 = por %p143, %p144
      %p146 = scmp.ne.s32.totalorder %s135, %s136
      %p147 = scmp.eq.s32.totalorder %s33, 0
      %p148 = por %p146, %p147
      %p149 = scmp.ne.s32.totalorder %s135, %s136
      %p150 = scmp.eq.s32.totalorder %s34, 1
      %p151 = por %p149, %p150
      %p153 = scmp.ne.s32.totalorder %s136, %s152
      %p154 = scmp.eq.s32.totalorder %s34, 0
      %p155 = por %p153, %p154
      %s156 = ssub.s32 %s35, %s47
      %p157 = scmp.eq.s32.totalorder %s156, 0
      %s159 = sadd.s32 %s158, 1
      %s160 = scalar_select %p157, %s158, %s159
      %p163 = pneg %p157
      %p164 = scmp.eq.s32.totalorder %s28, 1
      %p165 = por %p163, %p164
      %p166 = scmp.ne.s32.totalorder %s158, %s161
      %p167 = scmp.eq.s32.totalorder %s28, 0
      %p168 = por %p166, %p167
      %p169 = scmp.ne.s32.totalorder %s158, %s161
      %p170 = scmp.eq.s32.totalorder %s33, 1
      %p171 = por %p169, %p170
      %p172 = scmp.ne.s32.totalorder %s161, %s162
      %p173 = scmp.eq.s32.totalorder %s33, 0
      %p174 = por %p172, %p173
      %p175 = scmp.ne.s32.totalorder %s161, %s162
      %p176 = scmp.eq.s32.totalorder %s34, 1
      %p177 = por %p175, %p176
      %p179 = scmp.ne.s32.totalorder %s162, %s178
      %p180 = scmp.eq.s32.totalorder %s34, 0
      %p181 = por %p179, %p180
      %s183 = sadd.s32 %s182, 1
      %p186 = scmp.eq.s32.totalorder %s28, 1
      %p187 = scmp.ne.s32.totalorder %s182, %s184
      %p188 = scmp.eq.s32.totalorder %s28, 0
      %p189 = por %p187, %p188
      %p190 = scmp.ne.s32.totalorder %s182, %s184
      %p191 = scmp.eq.s32.totalorder %s33, 1
      %p192 = por %p190, %p191
      %p193 = scmp.ne.s32.totalorder %s184, %s185
      %p194 = scmp.eq.s32.totalorder %s33, 0
      %p195 = por %p193, %p194
      %p196 = scmp.ne.s32.totalorder %s184, %s185
      %p197 = scmp.eq.s32.totalorder %s34, 1
      %p198 = por %p196, %p197
      %p200 = scmp.ne.s32.totalorder %s185, %s199
      %p201 = scmp.eq.s32.totalorder %s34, 0
      %p202 = por %p200, %p201
      %s204 = sadd.s32 %s203, 1
      %p207 = scmp.eq.s32.totalorder %s28, 1
      %p208 = scmp.ne.s32.totalorder %s203, %s205
      %p209 = scmp.eq.s32.totalorder %s28, 0
      %p210 = por %p208, %p209
      %p211 = scmp.ne.s32.totalorder %s203, %s205
      %p212 = scmp.eq.s32.totalorder %s33, 1
      %p213 = por %p211, %p212
      %p214 = scmp.ne.s32.totalorder %s205, %s206
      %p215 = scmp.eq.s32.totalorder %s33, 0
      %p216 = por %p214, %p215
      %p217 = scmp.ne.s32.totalorder %s205, %s206
      %p218 = scmp.eq.s32.totalorder %s34, 1
      %p219 = por %p217, %p218
      %p221 = scmp.ne.s32.totalorder %s206, %s220
      %p222 = scmp.eq.s32.totalorder %s34, 0
      %p223 = por %p221, %p222
      %s225 = sadd.s32 %s224, 1
      %p228 = scmp.eq.s32.totalorder %s28, 1
      %p229 = scmp.ne.s32.totalorder %s224, %s226
      %p230 = scmp.eq.s32.totalorder %s28, 0
      %p231 = por %p229, %p230
      %p232 = scmp.ne.s32.totalorder %s224, %s226
      %p233 = scmp.eq.s32.totalorder %s33, 1
      %p234 = por %p232, %p233
      %p235 = scmp.ne.s32.totalorder %s226, %s227
      %p236 = scmp.eq.s32.totalorder %s33, 0
      %p237 = por %p235, %p236
      %p238 = scmp.ne.s32.totalorder %s226, %s227
      %p239 = scmp.eq.s32.totalorder %s34, 1
      %p240 = por %p238, %p239
      %p242 = scmp.ne.s32.totalorder %s227, %s241
      %p243 = scmp.eq.s32.totalorder %s34, 0
      %p244 = por %p242, %p243
      %s246 = sadd.s32 %s245, 1
      %p249 = scmp.eq.s32.totalorder %s28, 1
      %p250 = scmp.ne.s32.totalorder %s245, %s247
      %p251 = scmp.eq.s32.totalorder %s28, 0
      %p252 = por %p250, %p251
      %p253 = scmp.ne.s32.totalorder %s245, %s247
      %p254 = scmp.eq.s32.totalorder %s33, 1
      %p255 = por %p253, %p254
      %p256 = scmp.ne.s32.totalorder %s247, %s248
      %p257 = scmp.eq.s32.totalorder %s33, 0
      %p258 = por %p256, %p257
      %p259 = scmp.ne.s32.totalorder %s247, %s248
      %p260 = scmp.eq.s32.totalorder %s34, 1
      %p261 = por %p259, %p260
      %p263 = scmp.ne.s32.totalorder %s248, %s262
      %p264 = scmp.eq.s32.totalorder %s34, 0
      %p265 = por %p263, %p264
      %s267 = sadd.s32 %s266, 1
      %p270 = scmp.eq.s32.totalorder %s28, 1
      %p271 = scmp.ne.s32.totalorder %s266, %s268
      %p272 = scmp.eq.s32.totalorder %s28, 0
      %p273 = por %p271, %p272
      %p274 = scmp.ne.s32.totalorder %s266, %s268
      %p275 = scmp.eq.s32.totalorder %s33, 1
      %p276 = por %p274, %p275
      %p277 = scmp.ne.s32.totalorder %s268, %s269
      %p278 = scmp.eq.s32.totalorder %s33, 0
      %p279 = por %p277, %p278
      %p280 = scmp.ne.s32.totalorder %s268, %s269
      %p281 = scmp.eq.s32.totalorder %s34, 1
      %p282 = por %p280, %p281
      %p284 = scmp.ne.s32.totalorder %s269, %s283
      %p285 = scmp.eq.s32.totalorder %s34, 0
      %p286 = por %p284, %p285
      %s288 = sadd.s32 %s287, 1
      %p291 = scmp.eq.s32.totalorder %s28, 1
      %p292 = scmp.ne.s32.totalorder %s287, %s289
      %p293 = scmp.eq.s32.totalorder %s28, 0
      %p294 = por %p292, %p293
      %p295 = scmp.ne.s32.totalorder %s287, %s289
      %p296 = scmp.eq.s32.totalorder %s33, 1
      %p297 = por %p295, %p296
      %p298 = scmp.ne.s32.totalorder %s289, %s290
      %p299 = scmp.eq.s32.totalorder %s33, 0
      %p300 = por %p298, %p299
      %p301 = scmp.ne.s32.totalorder %s289, %s290
      %p302 = scmp.eq.s32.totalorder %s34, 1
      %p303 = por %p301, %p302
      %p305 = scmp.ne.s32.totalorder %s290, %s304
      %p306 = scmp.eq.s32.totalorder %s34, 0
      %p307 = por %p305, %p306
      %s308 = ssub.s32 %s36, %s43
      %s309 = ssub.s32 %s35, %s47
      %s310 = sor.u32 %s308, %s309
      %p311 = scmp.eq.s32.totalorder %s310, 0
      %s313 = sadd.s32 %s312, 1
      %s314 = scalar_select %p311, %s312, %s313
      %p317 = pneg %p311
      %p318 = scmp.eq.s32.totalorder %s28, 1
      %p319 = por %p317, %p318
      %p320 = scmp.ne.s32.totalorder %s312, %s315
      %p321 = scmp.eq.s32.totalorder %s28, 0
      %p322 = por %p320, %p321
      %p323 = scmp.ne.s32.totalorder %s312, %s315
      %p324 = scmp.eq.s32.totalorder %s33, 1
      %p325 = por %p323, %p324
      %p326 = scmp.ne.s32.totalorder %s315, %s316
      %p327 = scmp.eq.s32.totalorder %s33, 0
      %p328 = por %p326, %p327
      %p329 = scmp.ne.s32.totalorder %s315, %s316
      %p330 = scmp.eq.s32.totalorder %s34, 1
      %p331 = por %p329, %p330
      %p333 = scmp.ne.s32.totalorder %s316, %s332
      %p334 = scmp.eq.s32.totalorder %s34, 0
      %p335 = por %p333, %p334
      %s336 = ssub.s32 %s35, %s47
      %s337 = ssub.s32 %s36, %s43
      %s338 = sor.u32 %s336, %s337
      %p339 = scmp.eq.s32.totalorder %s338, 0
      %s341 = sadd.s32 %s340, 1
      %s342 = scalar_select %p339, %s340, %s341
      %p345 = pneg %p339
      %p346 = scmp.eq.s32.totalorder %s28, 1
      %p347 = por %p345, %p346
      %p348 = scmp.ne.s32.totalorder %s340, %s343
      %p349 = scmp.eq.s32.totalorder %s28, 0
      %p350 = por %p348, %p349
      %p351 = scmp.ne.s32.totalorder %s340, %s343
      %p352 = scmp.eq.s32.totalorder %s33, 1
      %p353 = por %p351, %p352
      %p354 = scmp.ne.s32.totalorder %s343, %s344
      %p355 = scmp.eq.s32.totalorder %s33, 0
      %p356 = por %p354, %p355
      %p357 = scmp.ne.s32.totalorder %s343, %s344
      %p358 = scmp.eq.s32.totalorder %s34, 1
      %p359 = por %p357, %p358
      %p361 = scmp.ne.s32.totalorder %s344, %s360
      %p362 = scmp.eq.s32.totalorder %s34, 0
      %p363 = por %p361, %p362
      %p364 = scmp.le.s32.totalorder 1, %s28
      %p365 = scmp.lt.s32.totalorder %s28, 3
      %p366 = pnand %p364, %p365
      %p367 = pneg %p366
      // Predicated region
      $region9: #{tpu_custom_call.1} parent=5 // pred_check
        _
      $region10: #{tpu_custom_call.1} parent=5 // pred_check_branch
        %369 = sbr.rel (%p366) target = $region12
      $region11: #{tpu_custom_call.1} parent=5 // pred_region
        %s370 = ssub.s32 %s28, 1
        // Predicated region
        $region13: #{tpu_custom_call.1} parent=11 // pred_check
          %p371 = pneg %p66
        $region14: #{tpu_custom_call.1} parent=11 // pred_check_branch
          %373 = sbr.rel (%p371) target = $region16
        $region15: #{tpu_custom_call.1} parent=11 // pred_region
          %s374 = smul.u32 2, %s38
          %p375 = scmp.lt.s32.totalorder %s374, 1
          %s376 = scalar_select %p375, %s374, 1
          %s377 = smul.addr %s376, 4
          %s378 = smul.addr %s377, 4
          %s379 = scalar_lea.vmem %s0, %s378
          %s380 = smul.u32 2, %s38
        $region16: #{tpu_custom_call.1} parent=11 // pred_fallthru
          _
        // Predicated region
        $region17: #{tpu_custom_call.1} parent=11 // pred_check
          %p381 = pneg %p92
        $region18: #{tpu_custom_call.1} parent=11 // pred_check_branch
          %383 = sbr.rel (%p381) target = $region20
        $region19: #{tpu_custom_call.1} parent=11 // pred_region
          %s384 = smul.u32 2, %s38
          %p385 = scmp.lt.s32.totalorder %s384, 1
          %s386 = scalar_select %p385, %s384, 1
          %s387 = smul.addr %s386, 2
          %s388 = smul.addr %s387, 8
          %s389 = scalar_lea.vmem %s1, %s388
          %s390 = smul.u32 2, %s38
        $region20: #{tpu_custom_call.1} parent=11 // pred_fallthru
          _
        // Predicated region
        $region21: #{tpu_custom_call.1} parent=11 // pred_check
          %p391 = pneg %p195
        $region22: #{tpu_custom_call.1} parent=11 // pred_check_branch
          %393 = sbr.rel (%p391) target = $region24
        $region23: #{tpu_custom_call.1} parent=11 // pred_region
          _
        $region24: #{tpu_custom_call.1} parent=11 // pred_fallthru
          _
        // Predicated region
        $region25: #{tpu_custom_call.1} parent=11 // pred_check
          %p394 = pneg %p216
        $region26: #{tpu_custom_call.1} parent=11 // pred_check_branch
          %396 = sbr.rel (%p394) target = $region28
        $region27: #{tpu_custom_call.1} parent=11 // pred_region
          _
        $region28: #{tpu_custom_call.1} parent=11 // pred_fallthru
          _
        // Predicated region
        $region29: #{tpu_custom_call.1} parent=11 // pred_check
          %p397 = pneg %p237
        $region30: #{tpu_custom_call.1} parent=11 // pred_check_branch
          %399 = sbr.rel (%p397) target = $region32
        $region31: #{tpu_custom_call.1} parent=11 // pred_region
          _
        $region32: #{tpu_custom_call.1} parent=11 // pred_fallthru
          _
        // Predicated region
        $region33: #{tpu_custom_call.1} parent=11 // pred_check
          %p400 = pneg %p258
        $region34: #{tpu_custom_call.1} parent=11 // pred_check_branch
          %402 = sbr.rel (%p400) target = $region36
        $region35: #{tpu_custom_call.1} parent=11 // pred_region
          _
        $region36: #{tpu_custom_call.1} parent=11 // pred_fallthru
          _
        // Predicated region
        $region37: #{tpu_custom_call.1} parent=11 // pred_check
          %p403 = pneg %p279
        $region38: #{tpu_custom_call.1} parent=11 // pred_check_branch
          %405 = sbr.rel (%p403) target = $region40
        $region39: #{tpu_custom_call.1} parent=11 // pred_region
          _
        $region40: #{tpu_custom_call.1} parent=11 // pred_fallthru
          _
        // Predicated region
        $region41: #{tpu_custom_call.1} parent=11 // pred_check
          %p406 = pneg %p300
        $region42: #{tpu_custom_call.1} parent=11 // pred_check_branch
          %408 = sbr.rel (%p406) target = $region44
        $region43: #{tpu_custom_call.1} parent=11 // pred_region
          _
        $region44: #{tpu_custom_call.1} parent=11 // pred_fallthru
          _
      $region12: #{tpu_custom_call.1} parent=5 // pred_fallthru
        _
      %p409 = scmp.lt.s32.totalorder %s28, 2
      // Predicated region
      $region45: #{tpu_custom_call.1} parent=5 // pred_check
        %p410 = pneg %p409
      $region46: #{tpu_custom_call.1} parent=5 // pred_check_branch
        %412 = sbr.rel (%p410) target = $region48
      $region47: #{tpu_custom_call.1} parent=5 // pred_region
        // Predicated region
        $region49: #{tpu_custom_call.1} parent=47 // pred_check
          %p413 = pneg %p114
        $region50: #{tpu_custom_call.1} parent=47 // pred_check_branch
          %415 = sbr.rel (%p413) target = $region52
        $region51: #{tpu_custom_call.1} parent=47 // pred_region
          %s416 = sand.u32 %s104, 1
          %s417 = scalar_lea.sflag [#allocation3], %s416
          %s418 = sand.u32 %s104, 1
          %s419 = smul.addr %s418, 16
          %s420 = scalar_lea.vmem [#allocation2], %s419
          %s421 = smul.u32 2, %s36
          %s423 = ssub.s32 256, 256
          %424 = vsyncadd %s417, %s423
          %s425 = smul.addr %s421, 2
          %s426 = smul.addr %s35, 4
          %s427 = sadd.s32 %s425, %s426
          %s428 = smul.addr %s427, 64
          %s429 = scalar_lea.hbm %s2, %s428
          %s430 = sshll.u32 %s420, 4
          %s431 = int_to_ptr.vmem [resolvable:$true] %s430
          %436 = dma.hbm_to_vmem [thread:$0]  %s429, 256, %s431, %s417, 64, 64, 4
        $region52: #{tpu_custom_call.1} parent=47 // pred_fallthru
          _
        // Predicated region
        $region53: #{tpu_custom_call.1} parent=47 // pred_check
          %p437 = pneg %p142
        $region54: #{tpu_custom_call.1} parent=47 // pred_check_branch
          %439 = sbr.rel (%p437) target = $region56
        $region55: #{tpu_custom_call.1} parent=47 // pred_region
          %s440 = sand.u32 %s28, 1
          %s441 = scalar_lea.sflag [#allocation6], %s440
          %s442 = sand.u32 %s132, 1
          %s443 = smul.addr %s442, 48
          %s444 = scalar_lea.vmem [#allocation5], %s443
          %s445 = smul.u32 2, %s36
          %s447 = ssub.s32 768, 768
          %448 = vsyncadd %s441, %s447
          %s449 = smul.addr %s445, 6
          %s450 = smul.addr %s35, 12
          %s451 = sadd.s32 %s449, %s450
          %s452 = smul.addr %s451, 64
          %s453 = scalar_lea.hbm %s3, %s452
          %s454 = sshll.u32 %s444, 4
          %s455 = int_to_ptr.vmem [resolvable:$true] %s454
          %460 = dma.hbm_to_vmem [thread:$0]  %s453, 768, %s455, %s441, 64, 64, 4
        $region56: #{tpu_custom_call.1} parent=47 // pred_fallthru
          _
        // Predicated region
        $region57: #{tpu_custom_call.1} parent=47 // pred_check
          %p461 = pneg %p168
        $region58: #{tpu_custom_call.1} parent=47 // pred_check_branch
          %463 = sbr.rel (%p461) target = $region60
        $region59: #{tpu_custom_call.1} parent=47 // pred_region
          %s464 = sand.u32 %s28, 1
          %s465 = scalar_lea.sflag [#allocation6], %s464
          %s466 = sand.u32 %s158, 1
          %s467 = smul.addr %s466, 512
          %s468 = scalar_lea.vmem [#allocation7], %s467
          %s470 = ssub.s32 8192, 8192
          %471 = vsyncadd %s465, %s470
          %s472 = smul.addr %s35, 128
          %s473 = smul.addr %s472, 64
          %s474 = scalar_lea.hbm %s4, %s473
          %s475 = sshll.u32 %s468, 4
          %s476 = int_to_ptr.vmem [resolvable:$true] %s475
          %481 = dma.hbm_to_vmem [thread:$0]  %s474, 8192, %s476, %s465, 256, 256, 16
        $region60: #{tpu_custom_call.1} parent=47 // pred_fallthru
          _
      $region48: #{tpu_custom_call.1} parent=5 // pred_fallthru
        _
      %p482 = scmp.le.s32.totalorder 1, %s28
      %p483 = scmp.lt.s32.totalorder %s28, 3
      %p484 = pnand %p482, %p483
      %p485 = pneg %p484
      // Predicated region
      $region61: #{tpu_custom_call.1} parent=5 // pred_check
        _
      $region62: #{tpu_custom_call.1} parent=5 // pred_check_branch
        %487 = sbr.rel (%p484) target = $region64
      $region63: #{tpu_custom_call.1} parent=5 // pred_region
        %s488 = ssub.s32 %s28, 1
        %s489 = sand.u32 %s107, 1
        %s490 = scalar_lea.sflag [#allocation3], %s489
        %s491 = sand.u32 %s107, 1
        %s492 = smul.addr %s491, 16
        %s493 = scalar_lea.vmem [#allocation2], %s492
        // Predicated region
        $region65: #{tpu_custom_call.1} parent=63 // pred_check
          %p494 = pneg %p120
        $region66: #{tpu_custom_call.1} parent=63 // pred_check_branch
          %496 = sbr.rel (%p494) target = $region68
        $region67: #{tpu_custom_call.1} parent=63 // pred_region
          %497 = dma.done %s490, 256
        $region68: #{tpu_custom_call.1} parent=63 // pred_fallthru
          _
        %s498 = sand.u32 %s33, 1
        %s499 = scalar_lea.sflag [#allocation6], %s498
        %s500 = sand.u32 %s135, 1
        %s501 = smul.addr %s500, 48
        %s502 = scalar_lea.vmem [#allocation5], %s501
        // Predicated region
        $region69: #{tpu_custom_call.1} parent=63 // pred_check
          %p503 = pneg %p148
        $region70: #{tpu_custom_call.1} parent=63 // pred_check_branch
          %505 = sbr.rel (%p503) target = $region72
        $region71: #{tpu_custom_call.1} parent=63 // pred_region
          %506 = dma.done %s499, 768
        $region72: #{tpu_custom_call.1} parent=63 // pred_fallthru
          _
        %s507 = sand.u32 %s33, 1
        %s508 = scalar_lea.sflag [#allocation6], %s507
        %s509 = sand.u32 %s161, 1
        %s510 = smul.addr %s509, 512
        %s511 = scalar_lea.vmem [#allocation7], %s510
        // Predicated region
        $region73: #{tpu_custom_call.1} parent=63 // pred_check
          %p512 = pneg %p174
        $region74: #{tpu_custom_call.1} parent=63 // pred_check_branch
          %514 = sbr.rel (%p512) target = $region76
        $region75: #{tpu_custom_call.1} parent=63 // pred_region
          %515 = dma.done %s508, 8192
        $region76: #{tpu_custom_call.1} parent=63 // pred_fallthru
          _
        %s516 = smul.u32 2, %s38
        %p517 = scmp.lt.s32.totalorder %s516, 1
        %s518 = scalar_select %p517, %s516, 1
        %s519 = smul.addr %s518, 4
        %s520 = smul.addr %s519, 4
        %s521 = scalar_lea.vmem %s0, %s520
        %p522 = pneg %p66
        %p523 = pneg %p63
        %s524 = smul.u32 2, %s38
        %p525 = scmp.lt.s32.totalorder %s524, 1
        %s526 = scalar_select %p525, %s524, 1
        %s527 = smul.addr %s526, 2
        %s528 = smul.addr %s527, 8
        %s529 = scalar_lea.vmem %s1, %s528
        %p530 = pneg %p92
        %p531 = pneg %p89
        %s532 = sand.u32 %s107, 1
        %s533 = scalar_lea.sflag [#allocation3], %s532
        %s534 = sand.u32 %s107, 1
        %s535 = smul.addr %s534, 16
        %s536 = scalar_lea.vmem [#allocation2], %s535
        %p537 = pneg %p120
        %p538 = pneg %p117
        %s539 = sand.u32 %s33, 1
        %s540 = scalar_lea.sflag [#allocation6], %s539
        %s541 = sand.u32 %s135, 1
        %s542 = smul.addr %s541, 48
        %s543 = scalar_lea.vmem [#allocation5], %s542
        %p544 = pneg %p148
        %p545 = pneg %p145
        %s546 = sand.u32 %s33, 1
        %s547 = scalar_lea.sflag [#allocation6], %s546
        %s548 = sand.u32 %s161, 1
        %s549 = smul.addr %s548, 512
        %s550 = scalar_lea.vmem [#allocation7], %s549
        %p551 = pneg %p174
        %p552 = pneg %p171
        %p553 = pneg %p195
        %p554 = pneg %p192
        %p555 = pneg %p216
        %p556 = pneg %p213
        %p557 = pneg %p237
        %p558 = pneg %p234
        %p559 = pneg %p258
        %p560 = pneg %p255
        %p561 = pneg %p279
        %p562 = pneg %p276
        %p563 = pneg %p300
        %p564 = pneg %p297
        %p565 = pneg %p328
        %p566 = pneg %p325
        %s567 = sand.u32 %s315, 1
        %s568 = scalar_lea.sflag [#allocation4], %s567
        %s569 = sand.u32 %s315, 1
        %s570 = smul.addr %s569, 16
        %s571 = scalar_lea.vmem [#allocation8], %s570
        %p572 = pneg %p356
        %p573 = pneg %p353
        %s574 = smul.u32 2, %s38
        %p575 = scmp.lt.s32.totalorder %s37, 1
        %s576 = scalar_select %p575, %s37, 1
        %p577 = scmp.lt.s32.totalorder %s574, 1
        %s578 = scalar_select %p577, %s574, 1
        %s579 = smul.addr %s578, 2
        %s580 = smul.addr %s576, 4
        %s581 = sadd.s32 %s579, %s580
        %s582 = smul.addr %s581, 8
        %s583 = scalar_lea.vmem %s12, %s582
        %s584 = smul.u32 2, %s38
        %p585 = scmp.lt.s32.totalorder %s584, 1
        %s586 = scalar_select %p585, %s584, 1
        %s587 = smul.addr %s586, 4
        %s588 = smul.addr %s587, 4
        %s589 = scalar_lea.vmem %s0, %s588
        %s590 = smul.u32 2, %s38
        %s591 = smul.u32 2, %s38
        %p592 = scmp.lt.s32.totalorder %s591, 1
        %s593 = scalar_select %p592, %s591, 1
        %s594 = smul.addr %s593, 2
        %s595 = smul.addr %s594, 8
        %s596 = scalar_lea.vmem %s1, %s595
        %s597 = smul.u32 2, %s38
        %s598 = smul.u32 2, %s38
        %s599 = smul.u32 2, %s38
        %s600 = smul.u32 2, %s38
        %s601 = smul.u32 2, %s38
        %p602 = scmp.lt.s32.totalorder %s37, 1
        %s603 = scalar_select %p602, %s37, 1
        %p604 = scmp.lt.s32.totalorder %s601, 1
        %s605 = scalar_select %p604, %s601, 1
        %s606 = smul.addr %s605, 2
        %s607 = smul.addr %s603, 4
        %s608 = sadd.s32 %s606, %s607
        %s609 = smul.addr %s608, 8
        %s610 = scalar_lea.vmem %s12, %s609
        %s611 = smul.u32 2, %s38
        %v613 = vld [vmem:[%s589] sm:$0xff]
        %v614 = vld [vmem:[%s589 + $0x8] sm:$0xff]
        %v615 = vld [vmem:[%s589 + $0x10] sm:$0xff]
        %v616 = vld [vmem:[%s589 + $0x18] sm:$0xff]
        %v617 = vld [vmem:[%s511] sm:$0xff]
        %v618 = vld [vmem:[%s511 + $0x8] sm:$0xff]
        %v619 = vld [vmem:[%s511 + $0x10] sm:$0xff]
        %v620 = vld [vmem:[%s511 + $0x18] sm:$0xff]
        %v621 = vld [vmem:[%s511 + $0x20] sm:$0xff]
        %v622 = vld [vmem:[%s511 + $0x28] sm:$0xff]
        %v623 = vld [vmem:[%s511 + $0x30] sm:$0xff]
        %v624 = vld [vmem:[%s511 + $0x38] sm:$0xff]
        %v625 = vld [vmem:[%s511 + $0x40] sm:$0xff]
        %v626 = vld [vmem:[%s511 + $0x48] sm:$0xff]
        %v627 = vld [vmem:[%s511 + $0x50] sm:$0xff]
        %v628 = vld [vmem:[%s511 + $0x58] sm:$0xff]
        %v629 = vld [vmem:[%s511 + $0x60] sm:$0xff]
        %v630 = vld [vmem:[%s511 + $0x68] sm:$0xff]
        %v631 = vld [vmem:[%s511 + $0x70] sm:$0xff]
        %v632 = vld [vmem:[%s511 + $0x78] sm:$0xff]
        %v633 = vld [vmem:[%s511 + $0x80] sm:$0xff]
        %v634 = vld [vmem:[%s511 + $0x88] sm:$0xff]
        %v635 = vld [vmem:[%s511 + $0x90] sm:$0xff]
        %v636 = vld [vmem:[%s511 + $0x98] sm:$0xff]
        %v637 = vld [vmem:[%s511 + $0xa0] sm:$0xff]
        %v638 = vld [vmem:[%s511 + $0xa8] sm:$0xff]
        %v639 = vld [vmem:[%s511 + $0xb0] sm:$0xff]
        %v640 = vld [vmem:[%s511 + $0xb8] sm:$0xff]
        %v641 = vld [vmem:[%s511 + $0xc0] sm:$0xff]
        %v642 = vld [vmem:[%s511 + $0xc8] sm:$0xff]
        %v643 = vld [vmem:[%s511 + $0xd0] sm:$0xff]
        %v644 = vld [vmem:[%s511 + $0xd8] sm:$0xff]
        %v645 = vld [vmem:[%s511 + $0xe0] sm:$0xff]
        %v646 = vld [vmem:[%s511 + $0xe8] sm:$0xff]
        %v647 = vld [vmem:[%s511 + $0xf0] sm:$0xff]
        %v648 = vld [vmem:[%s511 + $0xf8] sm:$0xff]
        %v649 = vld [vmem:[%s511 + $0x100] sm:$0xff]
        %v650 = vld [vmem:[%s511 + $0x108] sm:$0xff]
        %v651 = vld [vmem:[%s511 + $0x110] sm:$0xff]
        %v652 = vld [vmem:[%s511 + $0x118] sm:$0xff]
        %v653 = vld [vmem:[%s511 + $0x120] sm:$0xff]
        %v654 = vld [vmem:[%s511 + $0x128] sm:$0xff]
        %v655 = vld [vmem:[%s511 + $0x130] sm:$0xff]
        %v656 = vld [vmem:[%s511 + $0x138] sm:$0xff]
        %v657 = vld [vmem:[%s511 + $0x140] sm:$0xff]
        %v658 = vld [vmem:[%s511 + $0x148] sm:$0xff]
        %v659 = vld [vmem:[%s511 + $0x150] sm:$0xff]
        %v660 = vld [vmem:[%s511 + $0x158] sm:$0xff]
        %v661 = vld [vmem:[%s511 + $0x160] sm:$0xff]
        %v662 = vld [vmem:[%s511 + $0x168] sm:$0xff]
        %v663 = vld [vmem:[%s511 + $0x170] sm:$0xff]
        %v664 = vld [vmem:[%s511 + $0x178] sm:$0xff]
        %v665 = vld [vmem:[%s511 + $0x180] sm:$0xff]
        %v666 = vld [vmem:[%s511 + $0x188] sm:$0xff]
        %v667 = vld [vmem:[%s511 + $0x190] sm:$0xff]
        %v668 = vld [vmem:[%s511 + $0x198] sm:$0xff]
        %v669 = vld [vmem:[%s511 + $0x1a0] sm:$0xff]
        %v670 = vld [vmem:[%s511 + $0x1a8] sm:$0xff]
        %v671 = vld [vmem:[%s511 + $0x1b0] sm:$0xff]
        %v672 = vld [vmem:[%s511 + $0x1b8] sm:$0xff]
        %v673 = vld [vmem:[%s511 + $0x1c0] sm:$0xff]
        %v674 = vld [vmem:[%s511 + $0x1c8] sm:$0xff]
        %v675 = vld [vmem:[%s511 + $0x1d0] sm:$0xff]
        %v676 = vld [vmem:[%s511 + $0x1d8] sm:$0xff]
        %v677 = vld [vmem:[%s511 + $0x1e0] sm:$0xff]
        %v678 = vld [vmem:[%s511 + $0x1e8] sm:$0xff]
        %v679 = vld [vmem:[%s511 + $0x1f0] sm:$0xff]
        %v680 = vld [vmem:[%s511 + $0x1f8] sm:$0xff]
        %v685 = vunpack.c.l.b16 %v613
        %v686 = vunpack.c.h.b16 %v613
        %v687 = vunpack.c.l.b16 %v614
        %v688 = vunpack.c.h.b16 %v614
        %v689 = vunpack.c.l.b16 %v615
        %v690 = vunpack.c.h.b16 %v615
        %v691 = vunpack.c.l.b16 %v616
        %v692 = vunpack.c.h.b16 %v616
        %v693 = vpack.c.b16 %v687, %v685
        %v694 = vpack.c.b16 %v688, %v686
        %v695 = vpack.c.b16 %v691, %v689
        %v696 = vpack.c.b16 %v692, %v690
        %v765 = vunpack.c.l.b16 %v617
        %v766 = vunpack.c.h.b16 %v617
        %v767 = vunpack.c.l.b16 %v618
        %v768 = vunpack.c.h.b16 %v618
        %v769 = vunpack.c.l.b16 %v619
        %v770 = vunpack.c.h.b16 %v619
        %v771 = vunpack.c.l.b16 %v620
        %v772 = vunpack.c.h.b16 %v620
        %v773 = vunpack.c.l.b16 %v621
        %v774 = vunpack.c.h.b16 %v621
        %v775 = vunpack.c.l.b16 %v622
        %v776 = vunpack.c.h.b16 %v622
        %v777 = vunpack.c.l.b16 %v623
        %v778 = vunpack.c.h.b16 %v623
        %v779 = vunpack.c.l.b16 %v624
        %v780 = vunpack.c.h.b16 %v624
        %v781 = vunpack.c.l.b16 %v625
        %v782 = vunpack.c.h.b16 %v625
        %v783 = vunpack.c.l.b16 %v626
        %v784 = vunpack.c.h.b16 %v626
        %v785 = vunpack.c.l.b16 %v627
        %v786 = vunpack.c.h.b16 %v627
        %v787 = vunpack.c.l.b16 %v628
        %v788 = vunpack.c.h.b16 %v628
        %v789 = vunpack.c.l.b16 %v629
        %v790 = vunpack.c.h.b16 %v629
        %v791 = vunpack.c.l.b16 %v630
        %v792 = vunpack.c.h.b16 %v630
        %v793 = vunpack.c.l.b16 %v631
        %v794 = vunpack.c.h.b16 %v631
        %v795 = vunpack.c.l.b16 %v632
        %v796 = vunpack.c.h.b16 %v632
        %v797 = vunpack.c.l.b16 %v633
        %v798 = vunpack.c.h.b16 %v633
        %v799 = vunpack.c.l.b16 %v634
        %v800 = vunpack.c.h.b16 %v634
        %v801 = vunpack.c.l.b16 %v635
        %v802 = vunpack.c.h.b16 %v635
        %v803 = vunpack.c.l.b16 %v636
        %v804 = vunpack.c.h.b16 %v636
        %v805 = vunpack.c.l.b16 %v637
        %v806 = vunpack.c.h.b16 %v637
        %v807 = vunpack.c.l.b16 %v638
        %v808 = vunpack.c.h.b16 %v638
        %v809 = vunpack.c.l.b16 %v639
        %v810 = vunpack.c.h.b16 %v639
        %v811 = vunpack.c.l.b16 %v640
        %v812 = vunpack.c.h.b16 %v640
        %v813 = vunpack.c.l.b16 %v641
        %v814 = vunpack.c.h.b16 %v641
        %v815 = vunpack.c.l.b16 %v642
        %v816 = vunpack.c.h.b16 %v642
        %v817 = vunpack.c.l.b16 %v643
        %v818 = vunpack.c.h.b16 %v643
        %v819 = vunpack.c.l.b16 %v644
        %v820 = vunpack.c.h.b16 %v644
        %v821 = vunpack.c.l.b16 %v645
        %v822 = vunpack.c.h.b16 %v645
        %v823 = vunpack.c.l.b16 %v646
        %v824 = vunpack.c.h.b16 %v646
        %v825 = vunpack.c.l.b16 %v647
        %v826 = vunpack.c.h.b16 %v647
        %v827 = vunpack.c.l.b16 %v648
        %v828 = vunpack.c.h.b16 %v648
        %v829 = vunpack.c.l.b16 %v649
        %v830 = vunpack.c.h.b16 %v649
        %v831 = vunpack.c.l.b16 %v650
        %v832 = vunpack.c.h.b16 %v650
        %v833 = vunpack.c.l.b16 %v651
        %v834 = vunpack.c.h.b16 %v651
        %v835 = vunpack.c.l.b16 %v652
        %v836 = vunpack.c.h.b16 %v652
        %v837 = vunpack.c.l.b16 %v653
        %v838 = vunpack.c.h.b16 %v653
        %v839 = vunpack.c.l.b16 %v654
        %v840 = vunpack.c.h.b16 %v654
        %v841 = vunpack.c.l.b16 %v655
        %v842 = vunpack.c.h.b16 %v655
        %v843 = vunpack.c.l.b16 %v656
        %v844 = vunpack.c.h.b16 %v656
        %v845 = vunpack.c.l.b16 %v657
        %v846 = vunpack.c.h.b16 %v657
        %v847 = vunpack.c.l.b16 %v658
        %v848 = vunpack.c.h.b16 %v658
        %v849 = vunpack.c.l.b16 %v659
        %v850 = vunpack.c.h.b16 %v659
        %v851 = vunpack.c.l.b16 %v660
        %v852 = vunpack.c.h.b16 %v660
        %v853 = vunpack.c.l.b16 %v661
        %v854 = vunpack.c.h.b16 %v661
        %v855 = vunpack.c.l.b16 %v662
        %v856 = vunpack.c.h.b16 %v662
        %v857 = vunpack.c.l.b16 %v663
        %v858 = vunpack.c.h.b16 %v663
        %v859 = vunpack.c.l.b16 %v664
        %v860 = vunpack.c.h.b16 %v664
        %v861 = vunpack.c.l.b16 %v665
        %v862 = vunpack.c.h.b16 %v665
        %v863 = vunpack.c.l.b16 %v666
        %v864 = vunpack.c.h.b16 %v666
        %v865 = vunpack.c.l.b16 %v667
        %v866 = vunpack.c.h.b16 %v667
        %v867 = vunpack.c.l.b16 %v668
        %v868 = vunpack.c.h.b16 %v668
        %v869 = vunpack.c.l.b16 %v669
        %v870 = vunpack.c.h.b16 %v669
        %v871 = vunpack.c.l.b16 %v670
        %v872 = vunpack.c.h.b16 %v670
        %v873 = vunpack.c.l.b16 %v671
        %v874 = vunpack.c.h.b16 %v671
        %v875 = vunpack.c.l.b16 %v672
        %v876 = vunpack.c.h.b16 %v672
        %v877 = vunpack.c.l.b16 %v673
        %v878 = vunpack.c.h.b16 %v673
        %v879 = vunpack.c.l.b16 %v674
        %v880 = vunpack.c.h.b16 %v674
        %v881 = vunpack.c.l.b16 %v675
        %v882 = vunpack.c.h.b16 %v675
        %v883 = vunpack.c.l.b16 %v676
        %v884 = vunpack.c.h.b16 %v676
        %v885 = vunpack.c.l.b16 %v677
        %v886 = vunpack.c.h.b16 %v677
        %v887 = vunpack.c.l.b16 %v678
        %v888 = vunpack.c.h.b16 %v678
        %v889 = vunpack.c.l.b16 %v679
        %v890 = vunpack.c.h.b16 %v679
        %v891 = vunpack.c.l.b16 %v680
        %v892 = vunpack.c.h.b16 %v680
        %v893 = vpack.c.b16 %v769, %v765
        %v894 = vpack.c.b16 %v770, %v766
        %v895 = vpack.c.b16 %v771, %v767
        %v896 = vpack.c.b16 %v772, %v768
        %v897 = vpack.c.b16 %v777, %v773
        %v898 = vpack.c.b16 %v778, %v774
        %v899 = vpack.c.b16 %v779, %v775
        %v900 = vpack.c.b16 %v780, %v776
        %v901 = vpack.c.b16 %v785, %v781
        %v902 = vpack.c.b16 %v786, %v782
        %v903 = vpack.c.b16 %v787, %v783
        %v904 = vpack.c.b16 %v788, %v784
        %v905 = vpack.c.b16 %v793, %v789
        %v906 = vpack.c.b16 %v794, %v790
        %v907 = vpack.c.b16 %v795, %v791
        %v908 = vpack.c.b16 %v796, %v792
        %v909 = vpack.c.b16 %v801, %v797
        %v910 = vpack.c.b16 %v802, %v798
        %v911 = vpack.c.b16 %v803, %v799
        %v912 = vpack.c.b16 %v804, %v800
        %v913 = vpack.c.b16 %v809, %v805
        %v914 = vpack.c.b16 %v810, %v806
        %v915 = vpack.c.b16 %v811, %v807
        %v916 = vpack.c.b16 %v812, %v808
        %v917 = vpack.c.b16 %v817, %v813
        %v918 = vpack.c.b16 %v818, %v814
        %v919 = vpack.c.b16 %v819, %v815
        %v920 = vpack.c.b16 %v820, %v816
        %v921 = vpack.c.b16 %v825, %v821
        %v922 = vpack.c.b16 %v826, %v822
        %v923 = vpack.c.b16 %v827, %v823
        %v924 = vpack.c.b16 %v828, %v824
        %v925 = vpack.c.b16 %v833, %v829
        %v926 = vpack.c.b16 %v834, %v830
        %v927 = vpack.c.b16 %v835, %v831
        %v928 = vpack.c.b16 %v836, %v832
        %v929 = vpack.c.b16 %v841, %v837
        %v930 = vpack.c.b16 %v842, %v838
        %v931 = vpack.c.b16 %v843, %v839
        %v932 = vpack.c.b16 %v844, %v840
        %v933 = vpack.c.b16 %v849, %v845
        %v934 = vpack.c.b16 %v850, %v846
        %v935 = vpack.c.b16 %v851, %v847
        %v936 = vpack.c.b16 %v852, %v848
        %v937 = vpack.c.b16 %v857, %v853
        %v938 = vpack.c.b16 %v858, %v854
        %v939 = vpack.c.b16 %v859, %v855
        %v940 = vpack.c.b16 %v860, %v856
        %v941 = vpack.c.b16 %v865, %v861
        %v942 = vpack.c.b16 %v866, %v862
        %v943 = vpack.c.b16 %v867, %v863
        %v944 = vpack.c.b16 %v868, %v864
        %v945 = vpack.c.b16 %v873, %v869
        %v946 = vpack.c.b16 %v874, %v870
        %v947 = vpack.c.b16 %v875, %v871
        %v948 = vpack.c.b16 %v876, %v872
        %v949 = vpack.c.b16 %v881, %v877
        %v950 = vpack.c.b16 %v882, %v878
        %v951 = vpack.c.b16 %v883, %v879
        %v952 = vpack.c.b16 %v884, %v880
        %v953 = vpack.c.b16 %v889, %v885
        %v954 = vpack.c.b16 %v890, %v886
        %v955 = vpack.c.b16 %v891, %v887
        %v956 = vpack.c.b16 %v892, %v888
        %1021 = vmatprep.subr.bf16.mxu0 %v894
        %1022 = vmatpush1.bf16.msra.mxu0 %v893
        %1023 = vmatprep.subr.bf16.mxu0 %v898
        %1024 = vmatpush1.bf16.msra.mxu0 %v897
        %1025 = vmatprep.subr.bf16.mxu0 %v902
        %1026 = vmatpush1.bf16.msra.mxu0 %v901
        %1027 = vmatprep.subr.bf16.mxu0 %v906
        %1028 = vmatpush1.bf16.msra.mxu0 %v905
        %1029 = vmatprep.subr.bf16.mxu0 %v910
        %1030 = vmatpush1.bf16.msra.mxu0 %v909
        %1031 = vmatprep.subr.bf16.mxu0 %v914
        %1032 = vmatpush1.bf16.msra.mxu0 %v913
        %1033 = vmatprep.subr.bf16.mxu0 %v918
        %1034 = vmatpush1.bf16.msra.mxu0 %v917
        %1035 = vmatprep.subr.bf16.mxu0 %v922
        %1036 = vmatpush1.bf16.msra.mxu0 %v921
        %1037 = vmatprep.subr.bf16.mxu0 %v926
        %1038 = vmatpush1.bf16.msra.mxu0 %v925
        %1039 = vmatprep.subr.bf16.mxu0 %v930
        %1040 = vmatpush1.bf16.msra.mxu0 %v929
        %1041 = vmatprep.subr.bf16.mxu0 %v934
        %1042 = vmatpush1.bf16.msra.mxu0 %v933
        %1043 = vmatprep.subr.bf16.mxu0 %v938
        %1044 = vmatpush1.bf16.msra.mxu0 %v937
        %1045 = vmatprep.subr.bf16.mxu0 %v942
        %1046 = vmatpush1.bf16.msra.mxu0 %v941
        %1047 = vmatprep.subr.bf16.mxu0 %v946
        %1048 = vmatpush1.bf16.msra.mxu0 %v945
        %1049 = vmatprep.subr.bf16.mxu0 %v950
        %1050 = vmatpush1.bf16.msra.mxu0 %v949
        %1051 = vmatprep.subr.bf16.mxu0 %v954
        %1052 = vmatpush1.bf16.msra.mxu0 %v953
        %1053 = vmatprep.mubr.bf16.mxu0 %v694
        %1054 = vmatmul.mubr.bf16.gmra.mrb[0].mxu0 %v693
        %v1055 = vpop.f32.mrb[0].mxu0
        %v1056 = vadd.f32 0.0, %v1055
        %v1057 = vpop.f32.mrb[0].mxu0
        %v1058 = vadd.f32 0.0, %v1057
        %v1059 = vpop.f32.mrb[0].mxu0
        %v1060 = vadd.f32 0.0, %v1059
        %v1061 = vpop.f32.mrb[0].mxu0
        %v1062 = vadd.f32 0.0, %v1061
        %1063 = vmatprep.mubr.bf16.mxu0 %v696
        %1064 = vmatmul.mubr.bf16.gmra.mrb[0].mxu0 %v695
        %v1065 = vpop.f32.mrb[0].mxu0
        %v1066 = vadd.f32 0.0, %v1065
        %v1067 = vpop.f32.mrb[0].mxu0
        %v1068 = vadd.f32 0.0, %v1067
        %v1069 = vpop.f32.mrb[0].mxu0
        %v1070 = vadd.f32 0.0, %v1069
        %v1071 = vpop.f32.mrb[0].mxu0
        %v1072 = vadd.f32 0.0, %v1071
        %1073 = vdwg.mxu0
        %1074 = vmatprep.subr.bf16.mxu0 %v896
        %1075 = vmatpush1.bf16.msra.mxu0 %v895
        %1076 = vmatprep.subr.bf16.mxu0 %v900
        %1077 = vmatpush1.bf16.msra.mxu0 %v899
        %1078 = vmatprep.subr.bf16.mxu0 %v904
        %1079 = vmatpush1.bf16.msra.mxu0 %v903
        %1080 = vmatprep.subr.bf16.mxu0 %v908
        %1081 = vmatpush1.bf16.msra.mxu0 %v907
        %1082 = vmatprep.subr.bf16.mxu0 %v912
        %1083 = vmatpush1.bf16.msra.mxu0 %v911
        %1084 = vmatprep.subr.bf16.mxu0 %v916
        %1085 = vmatpush1.bf16.msra.mxu0 %v915
        %1086 = vmatprep.subr.bf16.mxu0 %v920
        %1087 = vmatpush1.bf16.msra.mxu0 %v919
        %1088 = vmatprep.subr.bf16.mxu0 %v924
        %1089 = vmatpush1.bf16.msra.mxu0 %v923
        %1090 = vmatprep.subr.bf16.mxu0 %v928
        %1091 = vmatpush1.bf16.msra.mxu0 %v927
        %1092 = vmatprep.subr.bf16.mxu0 %v932
        %1093 = vmatpush1.bf16.msra.mxu0 %v931
        %1094 = vmatprep.subr.bf16.mxu0 %v936
        %1095 = vmatpush1.bf16.msra.mxu0 %v935
        %1096 = vmatprep.subr.bf16.mxu0 %v940
        %1097 = vmatpush1.bf16.msra.mxu0 %v939
        %1098 = vmatprep.subr.bf16.mxu0 %v944
        %1099 = vmatpush1.bf16.msra.mxu0 %v943
        %1100 = vmatprep.subr.bf16.mxu0 %v948
        %1101 = vmatpush1.bf16.msra.mxu0 %v947
        %1102 = vmatprep.subr.bf16.mxu0 %v952
        %1103 = vmatpush1.bf16.msra.mxu0 %v951
        %1104 = vmatprep.subr.bf16.mxu0 %v956
        %1105 = vmatpush1.bf16.msra.mxu0 %v955
        %1106 = vmatprep.mubr.bf16.mxu0 %v694
        %1107 = vmatmul.mubr.bf16.gmra.mrb[0].mxu0 %v693
        %v1108 = vpop.f32.mrb[0].mxu0
        %v1109 = vadd.f32 0.0, %v1108
        %v1110 = vpop.f32.mrb[0].mxu0
        %v1111 = vadd.f32 0.0, %v1110
        %v1112 = vpop.f32.mrb[0].mxu0
        %v1113 = vadd.f32 0.0, %v1112
        %v1114 = vpop.f32.mrb[0].mxu0
        %v1115 = vadd.f32 0.0, %v1114
        %1116 = vmatprep.mubr.bf16.mxu0 %v696
        %1117 = vmatmul.mubr.bf16.gmra.mrb[0].mxu0 %v695
        %v1118 = vpop.f32.mrb[0].mxu0
        %v1119 = vadd.f32 0.0, %v1118
        %v1120 = vpop.f32.mrb[0].mxu0
        %v1121 = vadd.f32 0.0, %v1120
        %v1122 = vpop.f32.mrb[0].mxu0
        %v1123 = vadd.f32 0.0, %v1122
        %v1124 = vpop.f32.mrb[0].mxu0
        %v1125 = vadd.f32 0.0, %v1124
        %1126 = vdwg.mxu0
        %v1127 = vpack.c.bf16 %v1060, %v1056
        %v1128 = vpack.c.bf16 %v1070, %v1066
        %v1129 = vpack.c.bf16 %v1062, %v1058
        %v1130 = vpack.c.bf16 %v1072, %v1068
        %v1131 = vpack.c.bf16 %v1113, %v1109
        %v1132 = vpack.c.bf16 %v1123, %v1119
        %v1133 = vpack.c.bf16 %v1115, %v1111
        %v1134 = vpack.c.bf16 %v1125, %v1121
        %1135 = vmatprep.subr.bf16.mxu0 0
        %1136 = vmatpush1.bf16.xpose.msra.mxu0 %v1129
        %1137 = vmatprep.subr.bf16.mxu0 0
        %1138 = vmatpush1.bf16.xpose.msra.mxu0 0
        %1139 = vmatprep.subr.bf16.mxu0 0
        %1140 = vmatpush1.bf16.xpose.msra.mxu0 0
        %1141 = vmatprep.subr.bf16.mxu0 0
        %1142 = vmatpush1.bf16.xpose.msra.mxu0 0
        %1143 = vmatprep.subr.bf16.mxu0 0
        %1144 = vmatpush1.bf16.xpose.msra.mxu0 0
        %1145 = vmatprep.subr.bf16.mxu0 0
        %1146 = vmatpush1.bf16.xpose.msra.mxu0 0
        %1147 = vmatprep.subr.bf16.mxu0 0
        %1148 = vmatpush1.bf16.xpose.msra.mxu0 0
        %1149 = vmatprep.subr.bf16.mxu0 0
        %1150 = vmatpush1.bf16.xpose.msra.mxu0 0
        %1151 = vmatprep.subr.bf16.mxu0 0
        %1152 = vmatpush1.bf16.xpose.msra.mxu0 0
        %1153 = vmatprep.subr.bf16.mxu0 0
        %1154 = vmatpush1.bf16.xpose.msra.mxu0 0
        %1155 = vmatprep.subr.bf16.mxu0 0
        %1156 = vmatpush1.bf16.xpose.msra.mxu0 0
        %1157 = vmatprep.subr.bf16.mxu0 0
        %1158 = vmatpush1.bf16.xpose.msra.mxu0 0
        %1159 = vmatprep.subr.bf16.mxu0 0
        %1160 = vmatpush1.bf16.xpose.msra.mxu0 0
        %1161 = vmatprep.subr.bf16.mxu0 0
        %1162 = vmatpush1.bf16.xpose.msra.mxu0 0
        %1163 = vmatprep.subr.bf16.mxu0 0
        %1164 = vmatpush1.bf16.xpose.msra.mxu0 0
        %1165 = vmatprep.subr.bf16.mxu0 0
        %1166 = vmatpush1.bf16.xpose.msra.mxu0 0
        %1167 = vmatprep.mubr.bf16.mxu0 0
        %1168 = vmatmul.mubr.bf16.gmra.mrb[0].mxu0 %v1127
        %v1169 = vpop.f32.mrb[0].mxu0
        %v1170 = vadd.f32 0.0, %v1169
        %v1171 = vpop.f32.mrb[0].mxu0
        %v1172 = vpop.f32.mrb[0].mxu0
        %v1173 = vadd.f32 0.0, %v1172
        %v1174 = vpop.f32.mrb[0].mxu0
        %1175 = vdwg.mxu0
        %1176 = vmatprep.subr.bf16.mxu0 0
        %1177 = vmatpush1.bf16.xpose.msra.mxu0 %v1130
        %1178 = vmatprep.subr.bf16.mxu0 0
        %1179 = vmatpush1.bf16.xpose.msra.mxu0 0
        %1180 = vmatprep.subr.bf16.mxu0 0
        %1181 = vmatpush1.bf16.xpose.msra.mxu0 0
        %1182 = vmatprep.subr.bf16.mxu0 0
        %1183 = vmatpush1.bf16.xpose.msra.mxu0 0
        %1184 = vmatprep.subr.bf16.mxu0 0
        %1185 = vmatpush1.bf16.xpose.msra.mxu0 0
        %1186 = vmatprep.subr.bf16.mxu0 0
        %1187 = vmatpush1.bf16.xpose.msra.mxu0 0
        %1188 = vmatprep.subr.bf16.mxu0 0
        %1189 = vmatpush1.bf16.xpose.msra.mxu0 0
        %1190 = vmatprep.subr.bf16.mxu0 0
        %1191 = vmatpush1.bf16.xpose.msra.mxu0 0
        %1192 = vmatprep.subr.bf16.mxu0 0
        %1193 = vmatpush1.bf16.xpose.msra.mxu0 0
        %1194 = vmatprep.subr.bf16.mxu0 0
        %1195 = vmatpush1.bf16.xpose.msra.mxu0 0
        %1196 = vmatprep.subr.bf16.mxu0 0
        %1197 = vmatpush1.bf16.xpose.msra.mxu0 0
        %1198 = vmatprep.subr.bf16.mxu0 0
        %1199 = vmatpush1.bf16.xpose.msra.mxu0 0
        %1200 = vmatprep.subr.bf16.mxu0 0
        %1201 = vmatpush1.bf16.xpose.msra.mxu0 0
        %1202 = vmatprep.subr.bf16.mxu0 0
        %1203 = vmatpush1.bf16.xpose.msra.mxu0 0
        %1204 = vmatprep.subr.bf16.mxu0 0
        %1205 = vmatpush1.bf16.xpose.msra.mxu0 0
        %1206 = vmatprep.subr.bf16.mxu0 0
        %1207 = vmatpush1.bf16.xpose.msra.mxu0 0
        %1208 = vmatprep.mubr.bf16.mxu0 0
        %1209 = vmatmul.mubr.bf16.gmra.mrb[0].mxu0 %v1128
        %v1210 = vpop.f32.mrb[0].mxu0
        %v1211 = vadd.f32 0.0, %v1210
        %v1212 = vpop.f32.mrb[0].mxu0
        %v1213 = vpop.f32.mrb[0].mxu0
        %v1214 = vadd.f32 0.0, %v1213
        %v1215 = vpop.f32.mrb[0].mxu0
        %1216 = vdwg.mxu0
        %v1217 = vmul.f32 %v1170, 0.0625
        %v1218 = vmul.f32 %v1173, 0.0625
        %v1219 = vmul.f32 %v1211, 0.0625
        %v1220 = vmul.f32 %v1214, 0.0625
        %v1221 = vld [vmem:[%s493] sm:$0xf]
        %v1222 = vld [vmem:[%s493 + $0x4] sm:$0xf]
        %v1223 = vld [vmem:[%s493 + $0x8] sm:$0xf]
        %v1224 = vld [vmem:[%s493 + $0xc] sm:$0xf]
        %v1225 = vunpack.c.l.bf16 %v1221
        %v1226 = vunpack.c.l.bf16 %v1222
        %v1227 = vunpack.c.l.bf16 %v1223
        %v1228 = vunpack.c.l.bf16 %v1224
        %v1229 = vadd.f32 %v1217, %v1225
        %v1230 = vadd.f32 %v1218, %v1226
        %v1231 = vadd.f32 %v1219, %v1227
        %v1232 = vadd.f32 %v1220, %v1228
        %vm1233 = vcmask 130048
        %v1234 = vsel %vm1233, %v1229, -inf
        %1235 = vmax.xlane.f32.xlu0 %v1234
        %v1236 = vpop.xlane.xlu0 %1235
        %v1237 = vsel %vm1233, %v1230, -inf
        %1238 = vmax.xlane.f32.xlu0 %v1237
        %v1239 = vpop.xlane.xlu0 %1238
        %v1240 = vsel %vm1233, %v1231, -inf
        %1241 = vmax.xlane.f32.xlu0 %v1240
        %v1242 = vpop.xlane.xlu0 %1241
        %v1243 = vsel %vm1233, %v1232, -inf
        %1244 = vmax.xlane.f32.xlu0 %v1243
        %v1245 = vpop.xlane.xlu0 %1244
        %v1246 = vsub.f32 %v1229, %v1236
        %v1247 = vsub.f32 %v1230, %v1239
        %v1248 = vsub.f32 %v1231, %v1242
        %v1249 = vsub.f32 %v1232, %v1245
        %v1250 = vmul.f32 %v1246, 1.442695
        %v1251 = vpow.pop %v1250
        %v1252 = vmul.f32 %v1247, 1.442695
        %v1253 = vpow.pop %v1252
        %v1254 = vmul.f32 %v1248, 1.442695
        %v1255 = vpow.pop %v1254
        %v1256 = vmul.f32 %v1249, 1.442695
        %v1257 = vpow.pop %v1256
        %v1258 = vsel %vm1233, %v1251, 0.0
        %1259 = vadd.xlane.f32.xlu0 %v1258
        %v1260 = vpop.xlane.xlu0 %1259
        %v1261 = vsel %vm1233, %v1253, 0.0
        %1262 = vadd.xlane.f32.xlu0 %v1261
        %v1263 = vpop.xlane.xlu0 %1262
        %v1264 = vsel %vm1233, %v1255, 0.0
        %1265 = vadd.xlane.f32.xlu0 %v1264
        %v1266 = vpop.xlane.xlu0 %1265
        %v1267 = vsel %vm1233, %v1257, 0.0
        %1268 = vadd.xlane.f32.xlu0 %v1267
        %v1269 = vpop.xlane.xlu0 %1268
        %v1270 = vrcp.pop %v1260
        %v1271 = vrcp.pop %v1263
        %v1272 = vrcp.pop %v1266
        %v1273 = vrcp.pop %v1269
        %v1274 = vmul.f32 %v1251, %v1270
        %v1275 = vmul.f32 %v1253, %v1271
        %v1276 = vmul.f32 %v1255, %v1272
        %v1277 = vmul.f32 %v1257, %v1273
        %v1278 = vpack.c.bf16 %v1275, %v1274
        %v1279 = vpack.c.bf16 %v1277, %v1276
        %v1281 = vsel %vm1233, %v1278, 0
        %1283 = vmatprep.subr.bf16.mxu0 0
        %1284 = vmatpush1.bf16.msra.mxu0 %v1133
        %1285 = vmatprep.subr.bf16.mxu0 0
        %1286 = vmatpush1.bf16.msra.mxu0 0
        %1287 = vmatprep.subr.bf16.mxu0 0
        %1288 = vmatpush1.bf16.msra.mxu0 0
        %1289 = vmatprep.subr.bf16.mxu0 0
        %1290 = vmatpush1.bf16.msra.mxu0 0
        %1291 = vmatprep.subr.bf16.mxu0 0
        %1292 = vmatpush1.bf16.msra.mxu0 0
        %1293 = vmatprep.subr.bf16.mxu0 0
        %1294 = vmatpush1.bf16.msra.mxu0 0
        %1295 = vmatprep.subr.bf16.mxu0 0
        %1296 = vmatpush1.bf16.msra.mxu0 0
        %1297 = vmatprep.subr.bf16.mxu0 0
        %1298 = vmatpush1.bf16.msra.mxu0 0
        %1299 = vmatprep.subr.bf16.mxu0 0
        %1300 = vmatpush1.bf16.msra.mxu0 0
        %1301 = vmatprep.subr.bf16.mxu0 0
        %1302 = vmatpush1.bf16.msra.mxu0 0
        %1303 = vmatprep.subr.bf16.mxu0 0
        %1304 = vmatpush1.bf16.msra.mxu0 0
        %1305 = vmatprep.subr.bf16.mxu0 0
        %1306 = vmatpush1.bf16.msra.mxu0 0
        %1307 = vmatprep.subr.bf16.mxu0 0
        %1308 = vmatpush1.bf16.msra.mxu0 0
        %1309 = vmatprep.subr.bf16.mxu0 0
        %1310 = vmatpush1.bf16.msra.mxu0 0
        %1311 = vmatprep.subr.bf16.mxu0 0
        %1312 = vmatpush1.bf16.msra.mxu0 0
        %1313 = vmatprep.subr.bf16.mxu0 0
        %1314 = vmatpush1.bf16.msra.mxu0 0
        %1315 = vmatprep.mubr.bf16.mxu0 0
        %1316 = vmatmul.mubr.bf16.gmra.mrb[0].mxu0 %v1281
        %v1317 = vpop.f32.mrb[0].mxu0
        %v1318 = vadd.f32 0.0, %v1317
        %v1319 = vpop.f32.mrb[0].mxu0
        %v1320 = vpop.f32.mrb[0].mxu0
        %v1321 = vadd.f32 0.0, %v1320
        %v1322 = vpop.f32.mrb[0].mxu0
        %1323 = vdwg.mxu0
        %v1325 = vsel %vm1233, %v1279, 0
        %1327 = vmatprep.subr.bf16.mxu0 0
        %1328 = vmatpush1.bf16.msra.mxu0 %v1134
        %1329 = vmatprep.subr.bf16.mxu0 0
        %1330 = vmatpush1.bf16.msra.mxu0 0
        %1331 = vmatprep.subr.bf16.mxu0 0
        %1332 = vmatpush1.bf16.msra.mxu0 0
        %1333 = vmatprep.subr.bf16.mxu0 0
        %1334 = vmatpush1.bf16.msra.mxu0 0
        %1335 = vmatprep.subr.bf16.mxu0 0
        %1336 = vmatpush1.bf16.msra.mxu0 0
        %1337 = vmatprep.subr.bf16.mxu0 0
        %1338 = vmatpush1.bf16.msra.mxu0 0
        %1339 = vmatprep.subr.bf16.mxu0 0
        %1340 = vmatpush1.bf16.msra.mxu0 0
        %1341 = vmatprep.subr.bf16.mxu0 0
        %1342 = vmatpush1.bf16.msra.mxu0 0
        %1343 = vmatprep.subr.bf16.mxu0 0
        %1344 = vmatpush1.bf16.msra.mxu0 0
        %1345 = vmatprep.subr.bf16.mxu0 0
        %1346 = vmatpush1.bf16.msra.mxu0 0
        %1347 = vmatprep.subr.bf16.mxu0 0
        %1348 = vmatpush1.bf16.msra.mxu0 0
        %1349 = vmatprep.subr.bf16.mxu0 0
        %1350 = vmatpush1.bf16.msra.mxu0 0
        %1351 = vmatprep.subr.bf16.mxu0 0
        %1352 = vmatpush1.bf16.msra.mxu0 0
        %1353 = vmatprep.subr.bf16.mxu0 0
        %1354 = vmatpush1.bf16.msra.mxu0 0
        %1355 = vmatprep.subr.bf16.mxu0 0
        %1356 = vmatpush1.bf16.msra.mxu0 0
        %1357 = vmatprep.subr.bf16.mxu0 0
        %1358 = vmatpush1.bf16.msra.mxu0 0
        %1359 = vmatprep.mubr.bf16.mxu0 0
        %1360 = vmatmul.mubr.bf16.gmra.mrb[0].mxu0 %v1325
        %v1361 = vpop.f32.mrb[0].mxu0
        %v1362 = vadd.f32 0.0, %v1361
        %v1363 = vpop.f32.mrb[0].mxu0
        %v1364 = vpop.f32.mrb[0].mxu0
        %v1365 = vadd.f32 0.0, %v1364
        %v1366 = vpop.f32.mrb[0].mxu0
        %1367 = vdwg.mxu0
        %v1368 = vpack.c.bf16 %v1321, %v1318
        %v1369 = vpack.c.bf16 %v1365, %v1362
        %v1370 = vld [vmem:[%s5] sm:$0xff]
        %v1371 = vld [vmem:[%s5 + $0x8] sm:$0xf]
        %v1372 = vld [vmem:[%s5 + $0xc] sm:$0xff]
        %v1373 = vld [vmem:[%s5 + $0x14] sm:$0xf]
        %v1374 = vld [vmem:[%s5 + $0x18] sm:$0xff]
        %v1375 = vld [vmem:[%s5 + $0x20] sm:$0xf]
        %v1376 = vld [vmem:[%s5 + $0x24] sm:$0xff]
        %v1377 = vld [vmem:[%s5 + $0x2c] sm:$0xf]
        %v1378 = vld [vmem:[%s5 + $0x30] sm:$0xff]
        %v1379 = vld [vmem:[%s5 + $0x38] sm:$0xf]
        %v1380 = vld [vmem:[%s5 + $0x3c] sm:$0xff]
        %v1381 = vld [vmem:[%s5 + $0x44] sm:$0xf]
        %v1382 = vld [vmem:[%s5 + $0x48] sm:$0xff]
        %v1383 = vld [vmem:[%s5 + $0x50] sm:$0xf]
        %v1384 = vld [vmem:[%s5 + $0x54] sm:$0xff]
        %v1385 = vld [vmem:[%s5 + $0x5c] sm:$0xf]
        %v1386 = vld [vmem:[%s5 + $0x60] sm:$0xff]
        %v1387 = vld [vmem:[%s5 + $0x68] sm:$0xf]
        %v1388 = vld [vmem:[%s5 + $0x6c] sm:$0xff]
        %v1389 = vld [vmem:[%s5 + $0x74] sm:$0xf]
        %v1390 = vld [vmem:[%s5 + $0x78] sm:$0xff]
        %v1391 = vld [vmem:[%s5 + $0x80] sm:$0xf]
        %v1392 = vld [vmem:[%s5 + $0x84] sm:$0xff]
        %v1393 = vld [vmem:[%s5 + $0x8c] sm:$0xf]
        %v1394 = vld [vmem:[%s5 + $0x90] sm:$0xff]
        %v1395 = vld [vmem:[%s5 + $0x98] sm:$0xf]
        %v1396 = vld [vmem:[%s5 + $0x9c] sm:$0xff]
        %v1397 = vld [vmem:[%s5 + $0xa4] sm:$0xf]
        %v1398 = vld [vmem:[%s5 + $0xa8] sm:$0xff]
        %v1399 = vld [vmem:[%s5 + $0xb0] sm:$0xf]
        %v1400 = vld [vmem:[%s5 + $0xb4] sm:$0xff]
        %v1401 = vld [vmem:[%s5 + $0xbc] sm:$0xf]
        %v1402 = vld [vmem:[%s596] sm:$0xff]
        %v1403 = vld [vmem:[%s596 + $0x8] sm:$0xff]
        %v1404 = vld [vmem:[%s596 + $0x10] sm:$0xff]
        %v1405 = vld [vmem:[%s596 + $0x18] sm:$0xff]
        %v1406 = vld [vmem:[%s6] sm:$0x7]
        %1408 = vset.pattern.permute.xlu0 0
        %1409 = vperm.xlu0 %1408, %v1402
        %v1410 = vpop.permute.xlu0 %1409
        %1413 = vset.pattern.permute.xlu0 0
        %1414 = vperm.xlu0 %1413, %v1403
        %v1415 = vpop.permute.xlu0 %1414
        %1418 = vset.pattern.permute.xlu0 0
        %1419 = vperm.xlu0 %1418, %v1404
        %v1420 = vpop.permute.xlu0 %1419
        %1423 = vset.pattern.permute.xlu0 0
        %1424 = vperm.xlu0 %1423, %v1405
        %v1425 = vpop.permute.xlu0 %1424
        %v1428 = vlaneseq
        %v1429 = vshrl.u32 %v1428, 7
        %v1430 = vsub.s32 0, %v1429
        %v1431 = vrot.slane %v1406, %v1430
        %v1432 = vlaneseq
        %v1433 = vshrl.u32 %v1432, 7
        %v1434 = vsub.s32 1, %v1433
        %v1435 = vrot.slane %v1406, %v1434
        %v1436 = vlaneseq
        %v1437 = vshrl.u32 %v1436, 7
        %v1438 = vsub.s32 2, %v1437
        %v1439 = vrot.slane %v1406, %v1438
        %v1443 = vmul.f32 %v1410, %v1431
        %v1444 = vmul.f32 %v1410, %v1435
        %v1445 = vmul.f32 %v1410, %v1439
        %v1446 = vmul.f32 %v1415, %v1431
        %v1447 = vmul.f32 %v1415, %v1435
        %v1448 = vmul.f32 %v1415, %v1439
        %v1449 = vmul.f32 %v1420, %v1431
        %v1450 = vmul.f32 %v1420, %v1435
        %v1451 = vmul.f32 %v1420, %v1439
        %v1452 = vmul.f32 %v1425, %v1431
        %v1453 = vmul.f32 %v1425, %v1435
        %v1454 = vmul.f32 %v1425, %v1439
        %v1487 = vunpack.c.l.b16 %v1370
        %v1488 = vunpack.c.h.b16 %v1370
        %v1489 = vunpack.c.l.b16 %v1371
        %v1490 = vunpack.c.l.b16 %v1372
        %v1491 = vunpack.c.h.b16 %v1372
        %v1492 = vunpack.c.l.b16 %v1373
        %v1493 = vunpack.c.l.b16 %v1374
        %v1494 = vunpack.c.h.b16 %v1374
        %v1495 = vunpack.c.l.b16 %v1375
        %v1496 = vunpack.c.l.b16 %v1376
        %v1497 = vunpack.c.h.b16 %v1376
        %v1498 = vunpack.c.l.b16 %v1377
        %v1499 = vunpack.c.l.b16 %v1378
        %v1500 = vunpack.c.h.b16 %v1378
        %v1501 = vunpack.c.l.b16 %v1379
        %v1502 = vunpack.c.l.b16 %v1380
        %v1503 = vunpack.c.h.b16 %v1380
        %v1504 = vunpack.c.l.b16 %v1381
        %v1505 = vunpack.c.l.b16 %v1382
        %v1506 = vunpack.c.h.b16 %v1382
        %v1507 = vunpack.c.l.b16 %v1383
        %v1508 = vunpack.c.l.b16 %v1384
        %v1509 = vunpack.c.h.b16 %v1384
        %v1510 = vunpack.c.l.b16 %v1385
        %v1511 = vunpack.c.l.b16 %v1386
        %v1512 = vunpack.c.h.b16 %v1386
        %v1513 = vunpack.c.l.b16 %v1387
        %v1514 = vunpack.c.l.b16 %v1388
        %v1515 = vunpack.c.h.b16 %v1388
        %v1516 = vunpack.c.l.b16 %v1389
        %v1517 = vunpack.c.l.b16 %v1390
        %v1518 = vunpack.c.h.b16 %v1390
        %v1519 = vunpack.c.l.b16 %v1391
        %v1520 = vunpack.c.l.b16 %v1392
        %v1521 = vunpack.c.h.b16 %v1392
        %v1522 = vunpack.c.l.b16 %v1393
        %v1523 = vunpack.c.l.b16 %v1394
        %v1524 = vunpack.c.h.b16 %v1394
        %v1525 = vunpack.c.l.b16 %v1395
        %v1526 = vunpack.c.l.b16 %v1396
        %v1527 = vunpack.c.h.b16 %v1396
        %v1528 = vunpack.c.l.b16 %v1397
        %v1529 = vunpack.c.l.b16 %v1398
        %v1530 = vunpack.c.h.b16 %v1398
        %v1531 = vunpack.c.l.b16 %v1399
        %v1532 = vunpack.c.l.b16 %v1400
        %v1533 = vunpack.c.h.b16 %v1400
        %v1534 = vunpack.c.l.b16 %v1401
        %v1535 = vpack.c.b16 %v1490, %v1487
        %v1536 = vpack.c.b16 %v1491, %v1488
        %v1537 = vpack.c.b16 %v1492, %v1489
        %v1538 = vpack.c.b16 %v1496, %v1493
        %v1539 = vpack.c.b16 %v1497, %v1494
        %v1540 = vpack.c.b16 %v1498, %v1495
        %v1541 = vpack.c.b16 %v1502, %v1499
        %v1542 = vpack.c.b16 %v1503, %v1500
        %v1543 = vpack.c.b16 %v1504, %v1501
        %v1544 = vpack.c.b16 %v1508, %v1505
        %v1545 = vpack.c.b16 %v1509, %v1506
        %v1546 = vpack.c.b16 %v1510, %v1507
        %v1547 = vpack.c.b16 %v1514, %v1511
        %v1548 = vpack.c.b16 %v1515, %v1512
        %v1549 = vpack.c.b16 %v1516, %v1513
        %v1550 = vpack.c.b16 %v1520, %v1517
        %v1551 = vpack.c.b16 %v1521, %v1518
        %v1552 = vpack.c.b16 %v1522, %v1519
        %v1553 = vpack.c.b16 %v1526, %v1523
        %v1554 = vpack.c.b16 %v1527, %v1524
        %v1555 = vpack.c.b16 %v1528, %v1525
        %v1556 = vpack.c.b16 %v1532, %v1529
        %v1557 = vpack.c.b16 %v1533, %v1530
        %v1558 = vpack.c.b16 %v1534, %v1531
        %1583 = vmatprep.subr.bf16.mxu0 %v1536
        %1584 = vmatpush1.bf16.msra.mxu0 %v1535
        %1585 = vmatprep.subr.bf16.mxu0 %v1539
        %1586 = vmatpush1.bf16.msra.mxu0 %v1538
        %1587 = vmatprep.subr.bf16.mxu0 %v1542
        %1588 = vmatpush1.bf16.msra.mxu0 %v1541
        %1589 = vmatprep.subr.bf16.mxu0 %v1545
        %1590 = vmatpush1.bf16.msra.mxu0 %v1544
        %1591 = vmatprep.subr.bf16.mxu0 %v1548
        %1592 = vmatpush1.bf16.msra.mxu0 %v1547
        %1593 = vmatprep.subr.bf16.mxu0 %v1551
        %1594 = vmatpush1.bf16.msra.mxu0 %v1550
        %1595 = vmatprep.subr.bf16.mxu0 %v1554
        %1596 = vmatpush1.bf16.msra.mxu0 %v1553
        %1597 = vmatprep.subr.bf16.mxu0 %v1557
        %1598 = vmatpush1.bf16.msra.mxu0 %v1556
        %1599 = vmatprep.subr.bf16.mxu0 0
        %1600 = vmatpush1.bf16.msra.mxu0 0
        %1601 = vmatprep.subr.bf16.mxu0 0
        %1602 = vmatpush1.bf16.msra.mxu0 0
        %1603 = vmatprep.subr.bf16.mxu0 0
        %1604 = vmatpush1.bf16.msra.mxu0 0
        %1605 = vmatprep.subr.bf16.mxu0 0
        %1606 = vmatpush1.bf16.msra.mxu0 0
        %1607 = vmatprep.subr.bf16.mxu0 0
        %1608 = vmatpush1.bf16.msra.mxu0 0
        %1609 = vmatprep.subr.bf16.mxu0 0
        %1610 = vmatpush1.bf16.msra.mxu0 0
        %1611 = vmatprep.subr.bf16.mxu0 0
        %1612 = vmatpush1.bf16.msra.mxu0 0
        %1613 = vmatprep.subr.bf16.mxu0 0
        %1614 = vmatpush1.bf16.msra.mxu0 0
        %1615 = vmatprep.mubr.bf16.mxu0 0
        %1616 = vmatmul.mubr.bf16.gmra.mrb[0].mxu0 %v1368
        %v1617 = vpop.f32.mrb[0].mxu0
        %v1618 = vadd.f32 %v1443, %v1617
        %v1619 = vpop.f32.mrb[0].mxu0
        %v1620 = vadd.f32 %v1444, %v1619
        %v1621 = vpop.f32.mrb[0].mxu0
        %v1622 = vadd.f32 %v1446, %v1621
        %v1623 = vpop.f32.mrb[0].mxu0
        %v1624 = vadd.f32 %v1447, %v1623
        %1625 = vmatprep.mubr.bf16.mxu0 0
        %1626 = vmatmul.mubr.bf16.gmra.mrb[0].mxu0 %v1369
        %v1627 = vpop.f32.mrb[0].mxu0
        %v1628 = vadd.f32 %v1449, %v1627
        %v1629 = vpop.f32.mrb[0].mxu0
        %v1630 = vadd.f32 %v1450, %v1629
        %v1631 = vpop.f32.mrb[0].mxu0
        %v1632 = vadd.f32 %v1452, %v1631
        %v1633 = vpop.f32.mrb[0].mxu0
        %v1634 = vadd.f32 %v1453, %v1633
        %1635 = vdwg.mxu0
        %1636 = vmatprep.subr.bf16.mxu0 0
        %1637 = vmatpush1.bf16.msra.mxu0 %v1537
        %1638 = vmatprep.subr.bf16.mxu0 0
        %1639 = vmatpush1.bf16.msra.mxu0 %v1540
        %1640 = vmatprep.subr.bf16.mxu0 0
        %1641 = vmatpush1.bf16.msra.mxu0 %v1543
        %1642 = vmatprep.subr.bf16.mxu0 0
        %1643 = vmatpush1.bf16.msra.mxu0 %v1546
        %1644 = vmatprep.subr.bf16.mxu0 0
        %1645 = vmatpush1.bf16.msra.mxu0 %v1549
        %1646 = vmatprep.subr.bf16.mxu0 0
        %1647 = vmatpush1.bf16.msra.mxu0 %v1552
        %1648 = vmatprep.subr.bf16.mxu0 0
        %1649 = vmatpush1.bf16.msra.mxu0 %v1555
        %1650 = vmatprep.subr.bf16.mxu0 0
        %1651 = vmatpush1.bf16.msra.mxu0 %v1558
        %1652 = vmatprep.subr.bf16.mxu0 0
        %1653 = vmatpush1.bf16.msra.mxu0 0
        %1654 = vmatprep.subr.bf16.mxu0 0
        %1655 = vmatpush1.bf16.msra.mxu0 0
        %1656 = vmatprep.subr.bf16.mxu0 0
        %1657 = vmatpush1.bf16.msra.mxu0 0
        %1658 = vmatprep.subr.bf16.mxu0 0
        %1659 = vmatpush1.bf16.msra.mxu0 0
        %1660 = vmatprep.subr.bf16.mxu0 0
        %1661 = vmatpush1.bf16.msra.mxu0 0
        %1662 = vmatprep.subr.bf16.mxu0 0
        %1663 = vmatpush1.bf16.msra.mxu0 0
        %1664 = vmatprep.subr.bf16.mxu0 0
        %1665 = vmatpush1.bf16.msra.mxu0 0
        %1666 = vmatprep.subr.bf16.mxu0 0
        %1667 = vmatpush1.bf16.msra.mxu0 0
        %1668 = vmatprep.mubr.bf16.mxu0 0
        %1669 = vmatmul.mubr.bf16.gmra.mrb[0].mxu0 %v1368
        %v1670 = vpop.f32.mrb[0].mxu0
        %v1671 = vadd.f32 %v1445, %v1670
        %v1672 = vpop.f32.mrb[0].mxu0
        %v1673 = vpop.f32.mrb[0].mxu0
        %v1674 = vadd.f32 %v1448, %v1673
        %v1675 = vpop.f32.mrb[0].mxu0
        %1676 = vmatprep.mubr.bf16.mxu0 0
        %1677 = vmatmul.mubr.bf16.gmra.mrb[0].mxu0 %v1369
        %v1678 = vpop.f32.mrb[0].mxu0
        %v1679 = vadd.f32 %v1451, %v1678
        %v1680 = vpop.f32.mrb[0].mxu0
        %v1681 = vpop.f32.mrb[0].mxu0
        %v1682 = vadd.f32 %v1454, %v1681
        %v1683 = vpop.f32.mrb[0].mxu0
        %1684 = vdwg.mxu0
        %v1685 = vld [vmem:[%s7] sm:$0x7]
        %v1687 = vlaneseq
        %v1688 = vshrl.u32 %v1687, 7
        %v1689 = vsub.s32 0, %v1688
        %v1690 = vrot.slane %v1685, %v1689
        %v1691 = vlaneseq
        %v1692 = vshrl.u32 %v1691, 7
        %v1693 = vsub.s32 1, %v1692
        %v1694 = vrot.slane %v1685, %v1693
        %v1695 = vlaneseq
        %v1696 = vshrl.u32 %v1695, 7
        %v1697 = vsub.s32 2, %v1696
        %v1698 = vrot.slane %v1685, %v1697
        %v1702 = vadd.f32 %v1618, %v1690
        %v1703 = vadd.f32 %v1620, %v1694
        %v1704 = vadd.f32 %v1671, %v1698
        %v1705 = vadd.f32 %v1622, %v1690
        %v1706 = vadd.f32 %v1624, %v1694
        %v1707 = vadd.f32 %v1674, %v1698
        %v1708 = vadd.f32 %v1628, %v1690
        %v1709 = vadd.f32 %v1630, %v1694
        %v1710 = vadd.f32 %v1679, %v1698
        %v1711 = vadd.f32 %v1632, %v1690
        %v1712 = vadd.f32 %v1634, %v1694
        %v1713 = vadd.f32 %v1682, %v1698
        %v1714 = vxor.u32 %v1702, 2147483648
        %v1715 = vxor.u32 %v1703, 2147483648
        %v1716 = vxor.u32 %v1704, 2147483648
        %v1717 = vxor.u32 %v1705, 2147483648
        %v1718 = vxor.u32 %v1706, 2147483648
        %v1719 = vxor.u32 %v1707, 2147483648
        %v1720 = vxor.u32 %v1708, 2147483648
        %v1721 = vxor.u32 %v1709, 2147483648
        %v1722 = vxor.u32 %v1710, 2147483648
        %v1723 = vxor.u32 %v1711, 2147483648
        %v1724 = vxor.u32 %v1712, 2147483648
        %v1725 = vxor.u32 %v1713, 2147483648
        %v1726 = vmul.f32 %v1714, 1.442695
        %v1727 = vpow.pop %v1726
        %v1728 = vmul.f32 %v1715, 1.442695
        %v1729 = vpow.pop %v1728
        %v1730 = vmul.f32 %v1716, 1.442695
        %v1731 = vpow.pop %v1730
        %v1732 = vmul.f32 %v1717, 1.442695
        %v1733 = vpow.pop %v1732
        %v1734 = vmul.f32 %v1718, 1.442695
        %v1735 = vpow.pop %v1734
        %v1736 = vmul.f32 %v1719, 1.442695
        %v1737 = vpow.pop %v1736
        %v1738 = vmul.f32 %v1720, 1.442695
        %v1739 = vpow.pop %v1738
        %v1740 = vmul.f32 %v1721, 1.442695
        %v1741 = vpow.pop %v1740
        %v1742 = vmul.f32 %v1722, 1.442695
        %v1743 = vpow.pop %v1742
        %v1744 = vmul.f32 %v1723, 1.442695
        %v1745 = vpow.pop %v1744
        %v1746 = vmul.f32 %v1724, 1.442695
        %v1747 = vpow.pop %v1746
        %v1748 = vmul.f32 %v1725, 1.442695
        %v1749 = vpow.pop %v1748
        %v1750 = vadd.f32 %v1727, 1.0
        %v1751 = vadd.f32 %v1729, 1.0
        %v1752 = vadd.f32 %v1731, 1.0
        %v1753 = vadd.f32 %v1733, 1.0
        %v1754 = vadd.f32 %v1735, 1.0
        %v1755 = vadd.f32 %v1737, 1.0
        %v1756 = vadd.f32 %v1739, 1.0
        %v1757 = vadd.f32 %v1741, 1.0
        %v1758 = vadd.f32 %v1743, 1.0
        %v1759 = vadd.f32 %v1745, 1.0
        %v1760 = vadd.f32 %v1747, 1.0
        %v1761 = vadd.f32 %v1749, 1.0
        %v1762 = vrcp.pop %v1750
        %v1763 = vmul.f32 1.0, %v1762
        %v1764 = vrcp.pop %v1751
        %v1765 = vmul.f32 1.0, %v1764
        %v1766 = vrcp.pop %v1752
        %v1767 = vmul.f32 1.0, %v1766
        %v1768 = vrcp.pop %v1753
        %v1769 = vmul.f32 1.0, %v1768
        %v1770 = vrcp.pop %v1754
        %v1771 = vmul.f32 1.0, %v1770
        %v1772 = vrcp.pop %v1755
        %v1773 = vmul.f32 1.0, %v1772
        %v1774 = vrcp.pop %v1756
        %v1775 = vmul.f32 1.0, %v1774
        %v1776 = vrcp.pop %v1757
        %v1777 = vmul.f32 1.0, %v1776
        %v1778 = vrcp.pop %v1758
        %v1779 = vmul.f32 1.0, %v1778
        %v1780 = vrcp.pop %v1759
        %v1781 = vmul.f32 1.0, %v1780
        %v1782 = vrcp.pop %v1760
        %v1783 = vmul.f32 1.0, %v1782
        %v1784 = vrcp.pop %v1761
        %v1785 = vmul.f32 1.0, %v1784
        %v1786 = vpack.c.bf16 %v1769, %v1763
        %v1787 = vpack.c.bf16 %v1771, %v1765
        %v1788 = vpack.c.bf16 %v1773, %v1767
        %v1789 = vpack.c.bf16 %v1781, %v1775
        %v1790 = vpack.c.bf16 %v1783, %v1777
        %v1791 = vpack.c.bf16 %v1785, %v1779
        %v1792 = vld [vmem:[%s8] sm:$0xf]
        %v1793 = vld [vmem:[%s8 + $0x4] sm:$0xf]
        %v1794 = vld [vmem:[%s8 + $0x8] sm:$0xf]
        %v1795 = vld [vmem:[%s8 + $0xc] sm:$0xf]
        %v1796 = vld [vmem:[%s8 + $0x10] sm:$0xf]
        %v1797 = vld [vmem:[%s8 + $0x14] sm:$0xf]
        %v1798 = vld [vmem:[%s8 + $0x18] sm:$0xf]
        %v1799 = vld [vmem:[%s8 + $0x1c] sm:$0xf]
        %v1800 = vld [vmem:[%s8 + $0x20] sm:$0xf]
        %v1801 = vld [vmem:[%s8 + $0x24] sm:$0xf]
        %v1802 = vld [vmem:[%s8 + $0x28] sm:$0xf]
        %v1803 = vld [vmem:[%s8 + $0x2c] sm:$0xf]
        %v1804 = vld [vmem:[%s8 + $0x30] sm:$0xf]
        %v1805 = vld [vmem:[%s8 + $0x34] sm:$0xf]
        %v1806 = vld [vmem:[%s8 + $0x38] sm:$0xf]
        %v1807 = vld [vmem:[%s8 + $0x3c] sm:$0xf]
        %v1808 = vld [vmem:[%s8 + $0x40] sm:$0xf]
        %v1809 = vld [vmem:[%s8 + $0x44] sm:$0xf]
        %v1810 = vld [vmem:[%s8 + $0x48] sm:$0xf]
        %v1811 = vld [vmem:[%s8 + $0x4c] sm:$0xf]
        %v1812 = vld [vmem:[%s8 + $0x50] sm:$0xf]
        %v1813 = vld [vmem:[%s8 + $0x54] sm:$0xf]
        %v1814 = vld [vmem:[%s8 + $0x58] sm:$0xf]
        %v1815 = vld [vmem:[%s8 + $0x5c] sm:$0xf]
        %v1816 = vld [vmem:[%s8 + $0x60] sm:$0xf]
        %v1817 = vld [vmem:[%s8 + $0x64] sm:$0xf]
        %v1818 = vld [vmem:[%s8 + $0x68] sm:$0xf]
        %v1819 = vld [vmem:[%s8 + $0x6c] sm:$0xf]
        %v1820 = vld [vmem:[%s8 + $0x70] sm:$0xf]
        %v1821 = vld [vmem:[%s8 + $0x74] sm:$0xf]
        %v1822 = vld [vmem:[%s8 + $0x78] sm:$0xf]
        %v1823 = vld [vmem:[%s8 + $0x7c] sm:$0xf]
        %v1824 = vld [vmem:[%s8 + $0x80] sm:$0xf]
        %v1825 = vld [vmem:[%s8 + $0x84] sm:$0xf]
        %v1826 = vld [vmem:[%s8 + $0x88] sm:$0xf]
        %v1827 = vld [vmem:[%s8 + $0x8c] sm:$0xf]
        %v1828 = vld [vmem:[%s8 + $0x90] sm:$0xf]
        %v1829 = vld [vmem:[%s8 + $0x94] sm:$0xf]
        %v1830 = vld [vmem:[%s8 + $0x98] sm:$0xf]
        %v1831 = vld [vmem:[%s8 + $0x9c] sm:$0xf]
        %v1832 = vld [vmem:[%s8 + $0xa0] sm:$0xf]
        %v1833 = vld [vmem:[%s8 + $0xa4] sm:$0xf]
        %v1834 = vld [vmem:[%s8 + $0xa8] sm:$0xf]
        %v1835 = vld [vmem:[%s8 + $0xac] sm:$0xf]
        %v1836 = vld [vmem:[%s8 + $0xb0] sm:$0xf]
        %v1837 = vld [vmem:[%s8 + $0xb4] sm:$0xf]
        %v1838 = vld [vmem:[%s8 + $0xb8] sm:$0xf]
        %v1839 = vld [vmem:[%s8 + $0xbc] sm:$0xf]
        %v1888 = vunpack.c.l.b16 %v1792
        %v1889 = vunpack.c.l.b16 %v1793
        %v1890 = vunpack.c.l.b16 %v1794
        %v1891 = vunpack.c.l.b16 %v1795
        %v1892 = vunpack.c.l.b16 %v1796
        %v1893 = vunpack.c.l.b16 %v1797
        %v1894 = vunpack.c.l.b16 %v1798
        %v1895 = vunpack.c.l.b16 %v1799
        %v1896 = vunpack.c.l.b16 %v1800
        %v1897 = vunpack.c.l.b16 %v1801
        %v1898 = vunpack.c.l.b16 %v1802
        %v1899 = vunpack.c.l.b16 %v1803
        %v1900 = vunpack.c.l.b16 %v1804
        %v1901 = vunpack.c.l.b16 %v1805
        %v1902 = vunpack.c.l.b16 %v1806
        %v1903 = vunpack.c.l.b16 %v1807
        %v1904 = vunpack.c.l.b16 %v1808
        %v1905 = vunpack.c.l.b16 %v1809
        %v1906 = vunpack.c.l.b16 %v1810
        %v1907 = vunpack.c.l.b16 %v1811
        %v1908 = vunpack.c.l.b16 %v1812
        %v1909 = vunpack.c.l.b16 %v1813
        %v1910 = vunpack.c.l.b16 %v1814
        %v1911 = vunpack.c.l.b16 %v1815
        %v1912 = vunpack.c.l.b16 %v1816
        %v1913 = vunpack.c.l.b16 %v1817
        %v1914 = vunpack.c.l.b16 %v1818
        %v1915 = vunpack.c.l.b16 %v1819
        %v1916 = vunpack.c.l.b16 %v1820
        %v1917 = vunpack.c.l.b16 %v1821
        %v1918 = vunpack.c.l.b16 %v1822
        %v1919 = vunpack.c.l.b16 %v1823
        %v1920 = vunpack.c.l.b16 %v1824
        %v1921 = vunpack.c.l.b16 %v1825
        %v1922 = vunpack.c.l.b16 %v1826
        %v1923 = vunpack.c.l.b16 %v1827
        %v1924 = vunpack.c.l.b16 %v1828
        %v1925 = vunpack.c.l.b16 %v1829
        %v1926 = vunpack.c.l.b16 %v1830
        %v1927 = vunpack.c.l.b16 %v1831
        %v1928 = vunpack.c.l.b16 %v1832
        %v1929 = vunpack.c.l.b16 %v1833
        %v1930 = vunpack.c.l.b16 %v1834
        %v1931 = vunpack.c.l.b16 %v1835
        %v1932 = vunpack.c.l.b16 %v1836
        %v1933 = vunpack.c.l.b16 %v1837
        %v1934 = vunpack.c.l.b16 %v1838
        %v1935 = vunpack.c.l.b16 %v1839
        %v1936 = vpack.c.b16 %v1889, %v1888
        %v1937 = vpack.c.b16 %v1891, %v1890
        %v1938 = vpack.c.b16 %v1893, %v1892
        %v1939 = vpack.c.b16 %v1895, %v1894
        %v1940 = vpack.c.b16 %v1897, %v1896
        %v1941 = vpack.c.b16 %v1899, %v1898
        %v1942 = vpack.c.b16 %v1901, %v1900
        %v1943 = vpack.c.b16 %v1903, %v1902
        %v1944 = vpack.c.b16 %v1905, %v1904
        %v1945 = vpack.c.b16 %v1907, %v1906
        %v1946 = vpack.c.b16 %v1909, %v1908
        %v1947 = vpack.c.b16 %v1911, %v1910
        %v1948 = vpack.c.b16 %v1913, %v1912
        %v1949 = vpack.c.b16 %v1915, %v1914
        %v1950 = vpack.c.b16 %v1917, %v1916
        %v1951 = vpack.c.b16 %v1919, %v1918
        %v1952 = vpack.c.b16 %v1921, %v1920
        %v1953 = vpack.c.b16 %v1923, %v1922
        %v1954 = vpack.c.b16 %v1925, %v1924
        %v1955 = vpack.c.b16 %v1927, %v1926
        %v1956 = vpack.c.b16 %v1929, %v1928
        %v1957 = vpack.c.b16 %v1931, %v1930
        %v1958 = vpack.c.b16 %v1933, %v1932
        %v1959 = vpack.c.b16 %v1935, %v1934
        %1984 = vmatprep.subr.bf16.mxu0 0
        %1985 = vmatpush1.bf16.msra.mxu0 %v1936
        %1986 = vmatprep.subr.bf16.mxu0 0
        %1987 = vmatpush1.bf16.msra.mxu0 %v1937
        %1988 = vmatprep.subr.bf16.mxu0 0
        %1989 = vmatpush1.bf16.msra.mxu0 %v1938
        %1990 = vmatprep.subr.bf16.mxu0 0
        %1991 = vmatpush1.bf16.msra.mxu0 %v1939
        %1992 = vmatprep.subr.bf16.mxu0 0
        %1993 = vmatpush1.bf16.msra.mxu0 %v1940
        %1994 = vmatprep.subr.bf16.mxu0 0
        %1995 = vmatpush1.bf16.msra.mxu0 %v1941
        %1996 = vmatprep.subr.bf16.mxu0 0
        %1997 = vmatpush1.bf16.msra.mxu0 %v1942
        %1998 = vmatprep.subr.bf16.mxu0 0
        %1999 = vmatpush1.bf16.msra.mxu0 %v1943
        %2000 = vmatprep.subr.bf16.mxu0 0
        %2001 = vmatpush1.bf16.msra.mxu0 %v1944
        %2002 = vmatprep.subr.bf16.mxu0 0
        %2003 = vmatpush1.bf16.msra.mxu0 %v1945
        %2004 = vmatprep.subr.bf16.mxu0 0
        %2005 = vmatpush1.bf16.msra.mxu0 %v1946
        %2006 = vmatprep.subr.bf16.mxu0 0
        %2007 = vmatpush1.bf16.msra.mxu0 %v1947
        %2008 = vmatprep.subr.bf16.mxu0 0
        %2009 = vmatpush1.bf16.msra.mxu0 %v1948
        %2010 = vmatprep.subr.bf16.mxu0 0
        %2011 = vmatpush1.bf16.msra.mxu0 %v1949
        %2012 = vmatprep.subr.bf16.mxu0 0
        %2013 = vmatpush1.bf16.msra.mxu0 %v1950
        %2014 = vmatprep.subr.bf16.mxu0 0
        %2015 = vmatpush1.bf16.msra.mxu0 %v1951
        %2016 = vmatprep.mubr.bf16.mxu0 %v1787
        %2017 = vmatmul.mubr.bf16.gmra.mrb[0].mxu0 %v1786
        %v2018 = vpop.f32.mrb[0].mxu0
        %v2019 = vadd.f32 0.0, %v2018
        %v2020 = vpop.f32.mrb[0].mxu0
        %v2021 = vpop.f32.mrb[0].mxu0
        %v2022 = vadd.f32 0.0, %v2021
        %v2023 = vpop.f32.mrb[0].mxu0
        %2024 = vmatprep.mubr.bf16.mxu0 %v1790
        %2025 = vmatmul.mubr.bf16.gmra.mrb[0].mxu0 %v1789
        %v2026 = vpop.f32.mrb[0].mxu0
        %v2027 = vadd.f32 0.0, %v2026
        %v2028 = vpop.f32.mrb[0].mxu0
        %v2029 = vpop.f32.mrb[0].mxu0
        %v2030 = vadd.f32 0.0, %v2029
        %v2031 = vpop.f32.mrb[0].mxu0
        %2032 = vdwg.mxu0
        %2033 = vmatprep.subr.bf16.mxu0 0
        %2034 = vmatpush1.bf16.msra.mxu0 %v1952
        %2035 = vmatprep.subr.bf16.mxu0 0
        %2036 = vmatpush1.bf16.msra.mxu0 %v1953
        %2037 = vmatprep.subr.bf16.mxu0 0
        %2038 = vmatpush1.bf16.msra.mxu0 %v1954
        %2039 = vmatprep.subr.bf16.mxu0 0
        %2040 = vmatpush1.bf16.msra.mxu0 %v1955
        %2041 = vmatprep.subr.bf16.mxu0 0
        %2042 = vmatpush1.bf16.msra.mxu0 %v1956
        %2043 = vmatprep.subr.bf16.mxu0 0
        %2044 = vmatpush1.bf16.msra.mxu0 %v1957
        %2045 = vmatprep.subr.bf16.mxu0 0
        %2046 = vmatpush1.bf16.msra.mxu0 %v1958
        %2047 = vmatprep.subr.bf16.mxu0 0
        %2048 = vmatpush1.bf16.msra.mxu0 %v1959
        %2049 = vmatprep.subr.bf16.mxu0 0
        %2050 = vmatpush1.bf16.msra.mxu0 0
        %2051 = vmatprep.subr.bf16.mxu0 0
        %2052 = vmatpush1.bf16.msra.mxu0 0
        %2053 = vmatprep.subr.bf16.mxu0 0
        %2054 = vmatpush1.bf16.msra.mxu0 0
        %2055 = vmatprep.subr.bf16.mxu0 0
        %2056 = vmatpush1.bf16.msra.mxu0 0
        %2057 = vmatprep.subr.bf16.mxu0 0
        %2058 = vmatpush1.bf16.msra.mxu0 0
        %2059 = vmatprep.subr.bf16.mxu0 0
        %2060 = vmatpush1.bf16.msra.mxu0 0
        %2061 = vmatprep.subr.bf16.mxu0 0
        %2062 = vmatpush1.bf16.msra.mxu0 0
        %2063 = vmatprep.subr.bf16.mxu0 0
        %2064 = vmatpush1.bf16.msra.mxu0 0
        %2065 = vmatprep.mubr.bf16.mxu0 0
        %2066 = vmatmul.mubr.bf16.gmra.mrb[0].mxu0 %v1788
        %v2067 = vpop.f32.mrb[0].mxu0
        %v2068 = vadd.f32 %v2019, %v2067
        %v2069 = vpop.f32.mrb[0].mxu0
        %v2070 = vpop.f32.mrb[0].mxu0
        %v2071 = vadd.f32 %v2022, %v2070
        %v2072 = vpop.f32.mrb[0].mxu0
        %2073 = vmatprep.mubr.bf16.mxu0 0
        %2074 = vmatmul.mubr.bf16.gmra.mrb[0].mxu0 %v1791
        %v2075 = vpop.f32.mrb[0].mxu0
        %v2076 = vadd.f32 %v2027, %v2075
        %v2077 = vpop.f32.mrb[0].mxu0
        %v2078 = vpop.f32.mrb[0].mxu0
        %v2079 = vadd.f32 %v2030, %v2078
        %v2080 = vpop.f32.mrb[0].mxu0
        %2081 = vdwg.mxu0
        %v2082 = vld [vmem:[%s10] sm:$0x1]
        %v2084 = vlaneseq
        %v2085 = vshrl.u32 %v2084, 7
        %v2086 = vsub.s32 0, %v2085
        %v2087 = vrot.slane %v2082, %v2086
        %v2089 = vmul.f32 %v2068, %v2087
        %v2090 = vmul.f32 %v2071, %v2087
        %v2091 = vmul.f32 %v2076, %v2087
        %v2092 = vmul.f32 %v2079, %v2087
        %v2093 = vmax.f32 %v2089, 0.0
        %v2094 = vmax.f32 %v2090, 0.0
        %v2095 = vmax.f32 %v2091, 0.0
        %v2096 = vmax.f32 %v2092, 0.0
        %v2097 = vand.u32 2147483647, %v2089
        %v2098 = vand.u32 2147483647, %v2090
        %v2099 = vand.u32 2147483647, %v2091
        %v2100 = vand.u32 2147483647, %v2092
        %v2101 = vsub.f32 0.0, %v2097
        %v2102 = vsub.f32 0.0, %v2098
        %v2103 = vsub.f32 0.0, %v2099
        %v2104 = vsub.f32 0.0, %v2100
        %v2105 = vmul.f32 %v2101, 1.442695
        %v2106 = vpow.pop %v2105
        %v2107 = vmul.f32 %v2102, 1.442695
        %v2108 = vpow.pop %v2107
        %v2109 = vmul.f32 %v2103, 1.442695
        %v2110 = vpow.pop %v2109
        %v2111 = vmul.f32 %v2104, 1.442695
        %v2112 = vpow.pop %v2111
        %v2113 = vadd.f32 %v2106, 1.0
        %v2114 = vadd.f32 %v2108, 1.0
        %v2115 = vadd.f32 %v2110, 1.0
        %v2116 = vadd.f32 %v2112, 1.0
        %v2117 = vlog2.pop %v2113
        %v2118 = vmul.f32 %v2117, 0.6931472
        %v2119 = vlog2.pop %v2114
        %v2120 = vmul.f32 %v2119, 0.6931472
        %v2121 = vlog2.pop %v2115
        %v2122 = vmul.f32 %v2121, 0.6931472
        %v2123 = vlog2.pop %v2116
        %v2124 = vmul.f32 %v2123, 0.6931472
        %v2125 = vadd.f32 %v2093, %v2118
        %v2126 = vadd.f32 %v2094, %v2120
        %v2127 = vadd.f32 %v2095, %v2122
        %v2128 = vadd.f32 %v2096, %v2124
        %v2129 = vld [vmem:[%s9] sm:$0x1]
        %v2131 = vlaneseq
        %v2132 = vshrl.u32 %v2131, 7
        %v2133 = vsub.s32 0, %v2132
        %v2134 = vrot.slane %v2129, %v2133
        %v2136 = vmul.f32 %v2134, %v2125
        %v2137 = vmul.f32 %v2134, %v2126
        %v2138 = vmul.f32 %v2134, %v2127
        %v2139 = vmul.f32 %v2134, %v2128
        %vm2140 = vcmask 23552
        %2141 = vst.msk [vmem:[%s610] sm:$0xff] %vm2140, %v2136
        %2142 = vst.msk [vmem:[%s610 + $0x8] sm:$0xff] %vm2140, %v2137
        %2143 = vst.msk [vmem:[%s610 + $0x10] sm:$0xff] %vm2140, %v2138
        %2144 = vst.msk [vmem:[%s610 + $0x18] sm:$0xff] %vm2140, %v2139
        %v2145 = vld [vmem:[%s502] sm:$0xf]
        %v2146 = vld [vmem:[%s502 + $0x4] sm:$0xf]
        %v2147 = vld [vmem:[%s502 + $0x8] sm:$0xf]
        %v2148 = vld [vmem:[%s502 + $0xc] sm:$0xf]
        %v2149 = vld [vmem:[%s502 + $0x10] sm:$0xf]
        %v2150 = vld [vmem:[%s502 + $0x14] sm:$0xf]
        %v2151 = vld [vmem:[%s502 + $0x18] sm:$0xf]
        %v2152 = vld [vmem:[%s502 + $0x1c] sm:$0xf]
        %v2153 = vld [vmem:[%s502 + $0x20] sm:$0xf]
        %v2154 = vld [vmem:[%s502 + $0x24] sm:$0xf]
        %v2155 = vld [vmem:[%s502 + $0x28] sm:$0xf]
        %v2156 = vld [vmem:[%s502 + $0x2c] sm:$0xf]
        %v2157 = vunpack.c.l.bf16 %v2145
        %v2158 = vunpack.c.l.bf16 %v2146
        %v2159 = vunpack.c.l.bf16 %v2151
        %v2160 = vunpack.c.l.bf16 %v2152
        %2162 = vset.pattern.permute.xlu0 0
        %2163 = vperm.xlu0 %2162, %v2136
        %v2164 = vpop.permute.xlu0 %2163
        %2167 = vset.pattern.permute.xlu0 0
        %2168 = vperm.xlu0 %2167, %v2137
        %v2169 = vpop.permute.xlu0 %2168
        %2172 = vset.pattern.permute.xlu0 0
        %2173 = vperm.xlu0 %2172, %v2138
        %v2174 = vpop.permute.xlu0 %2173
        %2177 = vset.pattern.permute.xlu0 0
        %2178 = vperm.xlu0 %2177, %v2139
        %v2179 = vpop.permute.xlu0 %2178
        %v2181 = vmul.f32 %v2164, %v2157
        %v2182 = vmul.f32 %v2169, %v2158
        %v2183 = vmul.f32 %v2174, %v2159
        %v2184 = vmul.f32 %v2179, %v2160
        %v2185 = vunpack.c.l.bf16 %v2147
        %v2186 = vunpack.c.l.bf16 %v2148
        %v2187 = vunpack.c.l.bf16 %v2153
        %v2188 = vunpack.c.l.bf16 %v2154
        %2189 = vset.pattern.permute.xlu0 1
        %2190 = vperm.xlu0 %2189, %v2136
        %v2191 = vpop.permute.xlu0 %2190
        %2193 = vset.pattern.permute.xlu0 1
        %2194 = vperm.xlu0 %2193, %v2137
        %v2195 = vpop.permute.xlu0 %2194
        %2197 = vset.pattern.permute.xlu0 1
        %2198 = vperm.xlu0 %2197, %v2138
        %v2199 = vpop.permute.xlu0 %2198
        %2201 = vset.pattern.permute.xlu0 1
        %2202 = vperm.xlu0 %2201, %v2139
        %v2203 = vpop.permute.xlu0 %2202
        %v2205 = vmul.f32 %v2191, %v2185
        %v2206 = vmul.f32 %v2195, %v2186
        %v2207 = vmul.f32 %v2199, %v2187
        %v2208 = vmul.f32 %v2203, %v2188
        %v2209 = vadd.f32 %v2181, %v2205
        %v2210 = vadd.f32 %v2182, %v2206
        %v2211 = vadd.f32 %v2183, %v2207
        %v2212 = vadd.f32 %v2184, %v2208
        %v2213 = vunpack.c.l.bf16 %v2149
        %v2214 = vunpack.c.l.bf16 %v2150
        %v2215 = vunpack.c.l.bf16 %v2155
        %v2216 = vunpack.c.l.bf16 %v2156
        %2217 = vset.pattern.permute.xlu0 2
        %2218 = vperm.xlu0 %2217, %v2136
        %v2219 = vpop.permute.xlu0 %2218
        %2221 = vset.pattern.permute.xlu0 2
        %2222 = vperm.xlu0 %2221, %v2137
        %v2223 = vpop.permute.xlu0 %2222
        %2225 = vset.pattern.permute.xlu0 2
        %2226 = vperm.xlu0 %2225, %v2138
        %v2227 = vpop.permute.xlu0 %2226
        %2229 = vset.pattern.permute.xlu0 2
        %2230 = vperm.xlu0 %2229, %v2139
        %v2231 = vpop.permute.xlu0 %2230
        %v2233 = vmul.f32 %v2219, %v2213
        %v2234 = vmul.f32 %v2223, %v2214
        %v2235 = vmul.f32 %v2227, %v2215
        %v2236 = vmul.f32 %v2231, %v2216
        %v2237 = vadd.f32 %v2209, %v2233
        %v2238 = vadd.f32 %v2210, %v2234
        %v2239 = vadd.f32 %v2211, %v2235
        %v2240 = vadd.f32 %v2212, %v2236
        %v2241 = vmul.f32 %v1274, %v2237
        %v2242 = vmul.f32 %v1275, %v2238
        %v2243 = vmul.f32 %v1276, %v2239
        %v2244 = vmul.f32 %v1277, %v2240
        %v2245 = vpack.c.bf16 %v2242, %v2241
        %v2246 = vpack.c.bf16 %v2244, %v2243
        %v2248 = vsel %vm1233, %v2245, 0
        %2250 = vmatprep.subr.bf16.mxu0 0
        %2251 = vmatpush1.bf16.msra.mxu0 %v1131
        %2252 = vmatprep.subr.bf16.mxu0 0
        %2253 = vmatpush1.bf16.msra.mxu0 0
        %2254 = vmatprep.subr.bf16.mxu0 0
        %2255 = vmatpush1.bf16.msra.mxu0 0
        %2256 = vmatprep.subr.bf16.mxu0 0
        %2257 = vmatpush1.bf16.msra.mxu0 0
        %2258 = vmatprep.subr.bf16.mxu0 0
        %2259 = vmatpush1.bf16.msra.mxu0 0
        %2260 = vmatprep.subr.bf16.mxu0 0
        %2261 = vmatpush1.bf16.msra.mxu0 0
        %2262 = vmatprep.subr.bf16.mxu0 0
        %2263 = vmatpush1.bf16.msra.mxu0 0
        %2264 = vmatprep.subr.bf16.mxu0 0
        %2265 = vmatpush1.bf16.msra.mxu0 0
        %2266 = vmatprep.subr.bf16.mxu0 0
        %2267 = vmatpush1.bf16.msra.mxu0 0
        %2268 = vmatprep.subr.bf16.mxu0 0
        %2269 = vmatpush1.bf16.msra.mxu0 0
        %2270 = vmatprep.subr.bf16.mxu0 0
        %2271 = vmatpush1.bf16.msra.mxu0 0
        %2272 = vmatprep.subr.bf16.mxu0 0
        %2273 = vmatpush1.bf16.msra.mxu0 0
        %2274 = vmatprep.subr.bf16.mxu0 0
        %2275 = vmatpush1.bf16.msra.mxu0 0
        %2276 = vmatprep.subr.bf16.mxu0 0
        %2277 = vmatpush1.bf16.msra.mxu0 0
        %2278 = vmatprep.subr.bf16.mxu0 0
        %2279 = vmatpush1.bf16.msra.mxu0 0
        %2280 = vmatprep.subr.bf16.mxu0 0
        %2281 = vmatpush1.bf16.msra.mxu0 0
        %2282 = vmatprep.mubr.bf16.mxu0 0
        %2283 = vmatmul.mubr.bf16.gmra.mrb[0].mxu0 %v2248
        %v2284 = vpop.f32.mrb[0].mxu0
        %v2285 = vadd.f32 0.0, %v2284
        %v2286 = vpop.f32.mrb[0].mxu0
        %v2287 = vpop.f32.mrb[0].mxu0
        %v2288 = vadd.f32 0.0, %v2287
        %v2289 = vpop.f32.mrb[0].mxu0
        %2290 = vdwg.mxu0
        %v2292 = vsel %vm1233, %v2246, 0
        %2294 = vmatprep.subr.bf16.mxu0 0
        %2295 = vmatpush1.bf16.msra.mxu0 %v1132
        %2296 = vmatprep.subr.bf16.mxu0 0
        %2297 = vmatpush1.bf16.msra.mxu0 0
        %2298 = vmatprep.subr.bf16.mxu0 0
        %2299 = vmatpush1.bf16.msra.mxu0 0
        %2300 = vmatprep.subr.bf16.mxu0 0
        %2301 = vmatpush1.bf16.msra.mxu0 0
        %2302 = vmatprep.subr.bf16.mxu0 0
        %2303 = vmatpush1.bf16.msra.mxu0 0
        %2304 = vmatprep.subr.bf16.mxu0 0
        %2305 = vmatpush1.bf16.msra.mxu0 0
        %2306 = vmatprep.subr.bf16.mxu0 0
        %2307 = vmatpush1.bf16.msra.mxu0 0
        %2308 = vmatprep.subr.bf16.mxu0 0
        %2309 = vmatpush1.bf16.msra.mxu0 0
        %2310 = vmatprep.subr.bf16.mxu0 0
        %2311 = vmatpush1.bf16.msra.mxu0 0
        %2312 = vmatprep.subr.bf16.mxu0 0
        %2313 = vmatpush1.bf16.msra.mxu0 0
        %2314 = vmatprep.subr.bf16.mxu0 0
        %2315 = vmatpush1.bf16.msra.mxu0 0
        %2316 = vmatprep.subr.bf16.mxu0 0
        %2317 = vmatpush1.bf16.msra.mxu0 0
        %2318 = vmatprep.subr.bf16.mxu0 0
        %2319 = vmatpush1.bf16.msra.mxu0 0
        %2320 = vmatprep.subr.bf16.mxu0 0
        %2321 = vmatpush1.bf16.msra.mxu0 0
        %2322 = vmatprep.subr.bf16.mxu0 0
        %2323 = vmatpush1.bf16.msra.mxu0 0
        %2324 = vmatprep.subr.bf16.mxu0 0
        %2325 = vmatpush1.bf16.msra.mxu0 0
        %2326 = vmatprep.mubr.bf16.mxu0 0
        %2327 = vmatmul.mubr.bf16.gmra.mrb[0].mxu0 %v2292
        %v2328 = vpop.f32.mrb[0].mxu0
        %v2329 = vadd.f32 0.0, %v2328
        %v2330 = vpop.f32.mrb[0].mxu0
        %v2331 = vpop.f32.mrb[0].mxu0
        %v2332 = vadd.f32 0.0, %v2331
        %v2333 = vpop.f32.mrb[0].mxu0
        %2334 = vdwg.mxu0
        %v2335 = vpack.c.bf16 %v2288, %v2285
        %v2336 = vpack.c.bf16 %v2332, %v2329
        %v2339 = vunpack.c.l.b16 %v2335
        %v2340 = vunpack.c.h.b16 %v2335
        %v2341 = vunpack.c.l.b16 %v2336
        %v2342 = vunpack.c.h.b16 %v2336
        %v2343 = vpack.c.b16 %v2339, %v2339
        %v2344 = vpack.c.b16 %v2340, %v2340
        %v2345 = vpack.c.b16 %v2341, %v2341
        %v2346 = vpack.c.b16 %v2342, %v2342
        %2351 = vst [vmem:[%s571] sm:$0xf] %v2343
        %2352 = vst [vmem:[%s571 + $0x4] sm:$0xf] %v2344
        %2353 = vst [vmem:[%s571 + $0x8] sm:$0xf] %v2345
        %2354 = vst [vmem:[%s571 + $0xc] sm:$0xf] %v2346
        %s2355 = sand.u32 %s315, 1
        %s2356 = scalar_lea.sflag [#allocation4], %s2355
        %s2357 = sand.u32 %s315, 1
        %s2358 = smul.addr %s2357, 16
        %s2359 = scalar_lea.vmem [#allocation8], %s2358
        %s2360 = smul.u32 2, %s38
        %p2361 = scmp.lt.s32.totalorder %s37, 1
        %s2362 = scalar_select %p2361, %s37, 1
        %p2363 = scmp.lt.s32.totalorder %s2360, 1
        %s2364 = scalar_select %p2363, %s2360, 1
        %s2365 = smul.addr %s2364, 2
        %s2366 = smul.addr %s2362, 4
        %s2367 = sadd.s32 %s2365, %s2366
        %s2368 = smul.addr %s2367, 8
        %s2369 = scalar_lea.vmem %s12, %s2368
        // Predicated region
        $region77: #{tpu_custom_call.1} parent=63 // pred_check
          %p2370 = pneg %p325
        $region78: #{tpu_custom_call.1} parent=63 // pred_check_branch
          %2372 = sbr.rel (%p2370) target = $region80
        $region79: #{tpu_custom_call.1} parent=63 // pred_region
          %s2373 = smul.u32 2, %s38
          %s2375 = ssub.s32 256, 256
          %2376 = vsyncadd %s2356, %s2375
          %s2377 = smul.addr %s2373, 4
          %s2378 = sadd.s32 %s37, %s2377
          %s2379 = smul.addr %s2378, 64
          %s2380 = scalar_lea.hbm %s11, %s2379
          %s2381 = sshll.u32 %s2359, 4
          %s2382 = int_to_ptr.vmem [resolvable:$true] %s2381
          %2387 = dma.vmem_to_hbm [thread:$0]  %s2382, 256, %s2380, %s2356, 64, 128, 4
        $region80: #{tpu_custom_call.1} parent=63 // pred_fallthru
          _
        // Predicated region
        $region81: #{tpu_custom_call.1} parent=63 // pred_check
          %p2388 = pneg %p353
        $region82: #{tpu_custom_call.1} parent=63 // pred_check_branch
          %2390 = sbr.rel (%p2388) target = $region84
        $region83: #{tpu_custom_call.1} parent=63 // pred_region
          %s2391 = smul.u32 2, %s38
        $region84: #{tpu_custom_call.1} parent=63 // pred_fallthru
          _
      $region64: #{tpu_custom_call.1} parent=5 // pred_fallthru
        _
      %p2392 = scmp.le.s32.totalorder 2, %s28
      // Predicated region
      $region85: #{tpu_custom_call.1} parent=5 // pred_check
        %p2393 = pneg %p2392
      $region86: #{tpu_custom_call.1} parent=5 // pred_check_branch
        %2395 = sbr.rel (%p2393) target = $region88
      $region87: #{tpu_custom_call.1} parent=5 // pred_region
        %s2396 = ssub.s32 %s28, 2
        // Predicated region
        $region89: #{tpu_custom_call.1} parent=87 // pred_check
          %p2397 = pneg %p331
        $region90: #{tpu_custom_call.1} parent=87 // pred_check_branch
          %2399 = sbr.rel (%p2397) target = $region92
        $region91: #{tpu_custom_call.1} parent=87 // pred_region
          %s2400 = sand.u32 %s316, 1
          %s2401 = scalar_lea.sflag [#allocation4], %s2400
          %s2402 = sand.u32 %s316, 1
          %s2403 = smul.addr %s2402, 16
          %s2404 = scalar_lea.vmem [#allocation8], %s2403
          %2405 = dma.done %s2401, 256
        $region92: #{tpu_custom_call.1} parent=87 // pred_fallthru
          _
        // Predicated region
        $region93: #{tpu_custom_call.1} parent=87 // pred_check
          %p2406 = pneg %p359
        $region94: #{tpu_custom_call.1} parent=87 // pred_check_branch
          %2408 = sbr.rel (%p2406) target = $region96
        $region95: #{tpu_custom_call.1} parent=87 // pred_region
          %s2409 = smul.u32 2, %s40
          %p2410 = scmp.lt.s32.totalorder %s39, 1
          %s2411 = scalar_select %p2410, %s39, 1
          %p2412 = scmp.lt.s32.totalorder %s2409, 1
          %s2413 = scalar_select %p2412, %s2409, 1
          %s2414 = smul.addr %s2413, 2
          %s2415 = smul.addr %s2411, 4
          %s2416 = sadd.s32 %s2414, %s2415
          %s2417 = smul.addr %s2416, 8
          %s2418 = scalar_lea.vmem %s12, %s2417
        $region96: #{tpu_custom_call.1} parent=87 // pred_fallthru
          _
      $region88: #{tpu_custom_call.1} parent=5 // pred_fallthru
        _
    $region6: #{tpu_custom_call.1} parent=1 // loop_footer
      %s32 = sadd.s32 1, %s28
    $region7: #{tpu_custom_call.1} parent=1 // loop_footer_branch
      %27 = sbr.rel target = $region3
    $region8: #{tpu_custom_call.1} parent=1 // loop_exit
      _
    %2419 = vsyncpa [#allocation3], 1
    %s2420 = scalar_lea.sflag [#allocation3], 1
    %2421 = vsyncpa %s2420, 1
    %2422 = vsyncpa [#allocation6], 1
    %s2423 = scalar_lea.sflag [#allocation6], 1
    %2424 = vsyncpa %s2423, 1
    %2425 = vsyncpa [#allocation4], 1
    %s2426 = scalar_lea.sflag [#allocation4], 1
    %2427 = vsyncpa %s2426, 1

</llo_original>
